<compile_context>
chip_gen: v6e
topology: v6e:2x2x1
jax: 0.10.0
libtpu: 0.0.40
codegen_flags: <defaults>
</compile_context>

<pallas_src>
import functools

import jax
import jax.numpy as jnp
from jax.experimental import pallas as pl
from jax.experimental.pallas import tpu as pltpu


ZP = 128  # padded lane width for the 2-wide mean/logvar/z code


def _round_up(x, m):
    return (x + m - 1) // m * m


# ----------------------------------------------------------------------------
# Fused VAE forward kernel (single invocation, everything in VMEM)
# ----------------------------------------------------------------------------
def _vae_fused_kernel(*refs):
    """refs = (x, eps, w1, b1, ..., w10, b10, x_hat_out, ml_out).

    Weight order: enc1..enc4, fused mean|logvar head, dec1..dec5.
    Weights are bf16 (in, out) zero-padded to tile multiples; biases f32 (1, N).
    """
    x_ref, eps_ref = refs[0], refs[1]
    p = refs[2:-2]
    xhat_ref, ml_ref = refs[-2], refs[-1]

    def dense(h, w_ref, b_ref):
        # bf16 MXU matmul with f32 accumulate, f32 bias/epilogue.
        y = jnp.dot(h.astype(w_ref.dtype), w_ref[...],
                    preferred_element_type=jnp.float32)
        return y + b_ref[...]

    def lrelu(y):
        return jnp.where(y > 0, y, 0.2 * y)

    # ---- encoder: 4 x (Linear -> LeakyReLU(0.2)) ----
    h = x_ref[...]
    for i in range(4):
        h = lrelu(dense(h, p[2 * i], p[2 * i + 1]))

    # ---- fused mean|logvar head: one matmul, lane-dense (Mp, 2*ZP) output ----
    # columns [0, ZP) hold the mean head (first 2 real), [ZP, 2*ZP) the logvar head.
    ml = dense(h, p[8], p[9])
    ml_ref[...] = ml

    zp = eps_ref.shape[-1]                 # == ZP (tile-aligned static slices)
    mean_slab = ml[:, :zp]
    logvar_slab = ml[:, zp:]
    # reparameterize: z = mean + exp(0.5 * logvar) * eps
    # eps is zero outside the 2 real columns and the padded head columns are 0,
    # so padded z columns stay 0 (and decoder-1 weight rows >= 2 are 0 anyway).
    z = mean_slab + jnp.exp(0.5 * logvar_slab) * eps_ref[...]

    # ---- decoder: 4 x (Linear -> LeakyReLU(0.2)), final Linear -> Sigmoid ----
    h = z
    for i in range(4):
        h = lrelu(dense(h, p[10 + 2 * i], p[11 + 2 * i]))
    y = dense(h, p[18], p[19])
    # sigmoid: exp rides the EUP; approximate reciprocal also stays off the VALU.
    xhat_ref[...] = pl.reciprocal(1.0 + jnp.exp(-y), approx=True)


# ----------------------------------------------------------------------------
# Parameters: PyTorch nn.Linear-style init, pre-padded to TPU tiles at init time
# ----------------------------------------------------------------------------
def init_vae_params(key, input_dim, h1, h2, h3, latent_dim, w_dtype=jnp.bfloat16):
    def linear(k, fan_in, fan_out, kp, np_):
        kw, kb = jax.random.split(k)
        s = 1.0 / (fan_in ** 0.5)
        w = jax.random.uniform(kw, (fan_in, fan_out), jnp.float32, -s, s)
        b = jax.random.uniform(kb, (fan_out,), jnp.float32, -s, s)
        wp = jnp.zeros((kp, np_), w_dtype).at[:fan_in, :fan_out].set(w.astype(w_dtype))
        bp = jnp.zeros((1, np_), jnp.float32).at[0, :fan_out].set(b)
        return wp, bp

    Dp = _round_up(input_dim, 128)
    H1p = _round_up(h1, 128)
    H2p = _round_up(h2, 128)
    H3p = _round_up(h3, 128)
    Lp = _round_up(latent_dim, 128)

    keys = jax.random.split(key, 11)
    enc1 = linear(keys[0], input_dim, h1, Dp, H1p)
    enc2 = linear(keys[1], h1, h2, H1p, H2p)
    enc3 = linear(keys[2], h2, h3, H2p, H3p)
    enc4 = linear(keys[3], h3, latent_dim, H3p, Lp)

    # mean / logvar heads fused along N into one (Lp, 2*ZP) weight.
    wm, bm = linear(keys[4], latent_dim, 2, Lp, ZP)
    wl, bl = linear(keys[5], latent_dim, 2, Lp, ZP)
    wml = jnp.concatenate([wm, wl], axis=1)
    bml = jnp.concatenate([bm, bl], axis=1)

    dec1 = linear(keys[6], 2, latent_dim, ZP, Lp)
    dec2 = linear(keys[7], latent_dim, h3, Lp, H3p)
    dec3 = linear(keys[8], h3, h2, H3p, H2p)
    dec4 = linear(keys[9], h2, h1, H2p, H1p)
    dec5 = linear(keys[10], h1, input_dim, H1p, Dp)

    return (*enc1, *enc2, *enc3, *enc4, wml, bml,
            *dec1, *dec2, *dec3, *dec4, *dec5)


# ----------------------------------------------------------------------------
# Forward pass (mirrors VariationalAE_Flat128d.forward); jitted wrapper
# ----------------------------------------------------------------------------
@jax.jit
def vae_forward(flat_params, x, eps):
    """x: (B, input_dim) f32, eps: (B, 2) f32 ~ N(0,1). Returns (x_hat, mean, log_var)."""
    B, D = x.shape
    Mp = _round_up(B, 8)
    Dp = _round_up(D, 128)

    xp = jnp.zeros((Mp, Dp), jnp.float32).at[:B, :D].set(x)
    ep = jnp.zeros((Mp, ZP), jnp.float32).at[:B, :2].set(eps)

    vmem = pl.BlockSpec(memory_space=pltpu.MemorySpace.VMEM)
    n_in = 2 + len(flat_params)

    x_hat_p, ml_p = pl.pallas_call(
        _vae_fused_kernel,
        out_shape=(
            jax.ShapeDtypeStruct((Mp, Dp), jnp.float32),
            jax.ShapeDtypeStruct((Mp, 2 * ZP), jnp.float32),
        ),
        in_specs=[vmem] * n_in,
        out_specs=(vmem, vmem),
    )(xp, ep, *flat_params)

    x_hat = x_hat_p[:B, :D]
    mean = ml_p[:B, 0:2]
    log_var = ml_p[:B, ZP:ZP + 2]
    return x_hat, mean, log_var


# ----------------------------------------------------------------------------
if __name__ == "__main__":
    # Small shapes consistent with the module structure (scaled-down dims):
    # input_dim = 16*16 = 256 (flat image), hidden 512/256/128, latent 64,
    # mean/logvar dimension fixed at 2 (as in the module).
    batch = 8
    input_dim = 16 * 16
    h1, h2, h3, latent_dim = 512, 256, 128, 64

    key = jax.random.PRNGKey(0)
    k_param, k_x, k_eps = jax.random.split(key, 3)

    params = init_vae_params(k_param, input_dim, h1, h2, h3, latent_dim)
    x = jax.random.uniform(k_x, (batch, input_dim), jnp.float32)
    # torch.randn_like noise is generated outside the kernel and passed in.
    eps = jax.random.normal(k_eps, (batch, 2), jnp.float32)

    x_hat, mean, log_var = vae_forward(params, x, eps)
    jax.block_until_ready((x_hat, mean, log_var))

    assert x_hat.shape == (batch, input_dim)
    assert mean.shape == (batch, 2)
    assert log_var.shape == (batch, 2)
    assert bool(jnp.all(jnp.isfinite(x_hat)))
    assert bool(jnp.all(jnp.isfinite(mean))) and bool(jnp.all(jnp.isfinite(log_var)))
    # sigmoid output range (small tolerance for the approximate EUP reciprocal)
    assert bool(jnp.all((x_hat >= -1e-3) & (x_hat <= 1.0 + 1e-3)))

    print("KERNEL_OK")
</pallas_src>

<mosaic_0001>
module attributes {stable_mosaic.version = 11 : i64} {
  func.func @_vae_fused_kernel(%arg0: memref<8x256xf32, #tpu.memory_space<vmem>>, %arg1: memref<8x128xf32, #tpu.memory_space<vmem>>, %arg2: memref<256x512xbf16, #tpu.memory_space<vmem>>, %arg3: memref<1x512xf32, #tpu.memory_space<vmem>>, %arg4: memref<512x256xbf16, #tpu.memory_space<vmem>>, %arg5: memref<1x256xf32, #tpu.memory_space<vmem>>, %arg6: memref<256x128xbf16, #tpu.memory_space<vmem>>, %arg7: memref<1x128xf32, #tpu.memory_space<vmem>>, %arg8: memref<128x128xbf16, #tpu.memory_space<vmem>>, %arg9: memref<1x128xf32, #tpu.memory_space<vmem>>, %arg10: memref<128x256xbf16, #tpu.memory_space<vmem>>, %arg11: memref<1x256xf32, #tpu.memory_space<vmem>>, %arg12: memref<128x128xbf16, #tpu.memory_space<vmem>>, %arg13: memref<1x128xf32, #tpu.memory_space<vmem>>, %arg14: memref<128x128xbf16, #tpu.memory_space<vmem>>, %arg15: memref<1x128xf32, #tpu.memory_space<vmem>>, %arg16: memref<128x256xbf16, #tpu.memory_space<vmem>>, %arg17: memref<1x256xf32, #tpu.memory_space<vmem>>, %arg18: memref<256x512xbf16, #tpu.memory_space<vmem>>, %arg19: memref<1x512xf32, #tpu.memory_space<vmem>>, %arg20: memref<512x256xbf16, #tpu.memory_space<vmem>>, %arg21: memref<1x256xf32, #tpu.memory_space<vmem>>, %arg22: memref<8x256xf32, #tpu.memory_space<vmem>>, %arg23: memref<8x256xf32, #tpu.memory_space<vmem>>) attributes {dimension_semantics = [], scalar_prefetch = 0 : i64, scratch_operands = 0 : i64, tpu.core_type = #tpu.core_type<tc>} {
    %c0 = arith.constant 0 : index
    %c0_0 = arith.constant 0 : index
    %0 = vector.load %arg0[%c0, %c0_0] : memref<8x256xf32, #tpu.memory_space<vmem>>, vector<8x256xf32>
    %1 = arith.truncf %0 : vector<8x256xf32> to vector<8x256xbf16>
    %c0_1 = arith.constant 0 : index
    %c0_2 = arith.constant 0 : index
    %2 = vector.load %arg2[%c0_1, %c0_2] : memref<256x512xbf16, #tpu.memory_space<vmem>>, vector<256x512xbf16>
    %cst = arith.constant dense<0.000000e+00> : vector<8x512xf32>
    %3 = tpu.matmul %1, %2, %cst {dimension_numbers = #tpu.dot_dimension_numbers<[1], [0], [0], [1], [0, 0, 1, 1], [], []>} : vector<8x256xbf16>, vector<256x512xbf16>, vector<8x512xf32> -> vector<8x512xf32>
    %c0_3 = arith.constant 0 : index
    %c0_4 = arith.constant 0 : index
    %4 = vector.load %arg3[%c0_3, %c0_4] : memref<1x512xf32, #tpu.memory_space<vmem>>, vector<1x512xf32>
    %5 = vector.broadcast %4 : vector<1x512xf32> to vector<8x512xf32>
    %6 = arith.addf %3, %5 : vector<8x512xf32>
    %cst_5 = arith.constant 0.000000e+00 : f32
    %7 = vector.broadcast %cst_5 : f32 to vector<8x512xf32>
    %8 = arith.cmpf ogt, %6, %7 : vector<8x512xf32>
    %cst_6 = arith.constant 2.000000e-01 : f32
    %9 = vector.broadcast %cst_6 : f32 to vector<8x512xf32>
    %10 = arith.mulf %9, %6 : vector<8x512xf32>
    %11 = arith.select %8, %6, %10 : vector<8x512xi1>, vector<8x512xf32>
    %12 = arith.truncf %11 : vector<8x512xf32> to vector<8x512xbf16>
    %c0_7 = arith.constant 0 : index
    %c0_8 = arith.constant 0 : index
    %13 = vector.load %arg4[%c0_7, %c0_8] : memref<512x256xbf16, #tpu.memory_space<vmem>>, vector<512x256xbf16>
    %cst_9 = arith.constant dense<0.000000e+00> : vector<8x256xf32>
    %14 = tpu.matmul %12, %13, %cst_9 {dimension_numbers = #tpu.dot_dimension_numbers<[1], [0], [0], [1], [0, 0, 1, 1], [], []>} : vector<8x512xbf16>, vector<512x256xbf16>, vector<8x256xf32> -> vector<8x256xf32>
    %c0_10 = arith.constant 0 : index
    %c0_11 = arith.constant 0 : index
    %15 = vector.load %arg5[%c0_10, %c0_11] : memref<1x256xf32, #tpu.memory_space<vmem>>, vector<1x256xf32>
    %16 = vector.broadcast %15 : vector<1x256xf32> to vector<8x256xf32>
    %17 = arith.addf %14, %16 : vector<8x256xf32>
    %cst_12 = arith.constant 0.000000e+00 : f32
    %18 = vector.broadcast %cst_12 : f32 to vector<8x256xf32>
    %19 = arith.cmpf ogt, %17, %18 : vector<8x256xf32>
    %cst_13 = arith.constant 2.000000e-01 : f32
    %20 = vector.broadcast %cst_13 : f32 to vector<8x256xf32>
    %21 = arith.mulf %20, %17 : vector<8x256xf32>
    %22 = arith.select %19, %17, %21 : vector<8x256xi1>, vector<8x256xf32>
    %23 = arith.truncf %22 : vector<8x256xf32> to vector<8x256xbf16>
    %c0_14 = arith.constant 0 : index
    %c0_15 = arith.constant 0 : index
    %24 = vector.load %arg6[%c0_14, %c0_15] : memref<256x128xbf16, #tpu.memory_space<vmem>>, vector<256x128xbf16>
    %cst_16 = arith.constant dense<0.000000e+00> : vector<8x128xf32>
    %25 = tpu.matmul %23, %24, %cst_16 {dimension_numbers = #tpu.dot_dimension_numbers<[1], [0], [0], [1], [0, 0, 1, 1], [], []>} : vector<8x256xbf16>, vector<256x128xbf16>, vector<8x128xf32> -> vector<8x128xf32>
    %c0_17 = arith.constant 0 : index
    %c0_18 = arith.constant 0 : index
    %26 = vector.load %arg7[%c0_17, %c0_18] : memref<1x128xf32, #tpu.memory_space<vmem>>, vector<1x128xf32>
    %27 = vector.broadcast %26 : vector<1x128xf32> to vector<8x128xf32>
    %28 = arith.addf %25, %27 : vector<8x128xf32>
    %cst_19 = arith.constant 0.000000e+00 : f32
    %29 = vector.broadcast %cst_19 : f32 to vector<8x128xf32>
    %30 = arith.cmpf ogt, %28, %29 : vector<8x128xf32>
    %cst_20 = arith.constant 2.000000e-01 : f32
    %31 = vector.broadcast %cst_20 : f32 to vector<8x128xf32>
    %32 = arith.mulf %31, %28 : vector<8x128xf32>
    %33 = arith.select %30, %28, %32 : vector<8x128xi1>, vector<8x128xf32>
    %34 = arith.truncf %33 : vector<8x128xf32> to vector<8x128xbf16>
    %c0_21 = arith.constant 0 : index
    %c0_22 = arith.constant 0 : index
    %35 = vector.load %arg8[%c0_21, %c0_22] : memref<128x128xbf16, #tpu.memory_space<vmem>>, vector<128x128xbf16>
    %cst_23 = arith.constant dense<0.000000e+00> : vector<8x128xf32>
    %36 = tpu.matmul %34, %35, %cst_23 {dimension_numbers = #tpu.dot_dimension_numbers<[1], [0], [0], [1], [0, 0, 1, 1], [], []>} : vector<8x128xbf16>, vector<128x128xbf16>, vector<8x128xf32> -> vector<8x128xf32>
    %c0_24 = arith.constant 0 : index
    %c0_25 = arith.constant 0 : index
    %37 = vector.load %arg9[%c0_24, %c0_25] : memref<1x128xf32, #tpu.memory_space<vmem>>, vector<1x128xf32>
    %38 = vector.broadcast %37 : vector<1x128xf32> to vector<8x128xf32>
    %39 = arith.addf %36, %38 : vector<8x128xf32>
    %cst_26 = arith.constant 0.000000e+00 : f32
    %40 = vector.broadcast %cst_26 : f32 to vector<8x128xf32>
    %41 = arith.cmpf ogt, %39, %40 : vector<8x128xf32>
    %cst_27 = arith.constant 2.000000e-01 : f32
    %42 = vector.broadcast %cst_27 : f32 to vector<8x128xf32>
    %43 = arith.mulf %42, %39 : vector<8x128xf32>
    %44 = arith.select %41, %39, %43 : vector<8x128xi1>, vector<8x128xf32>
    %45 = arith.truncf %44 : vector<8x128xf32> to vector<8x128xbf16>
    %c0_28 = arith.constant 0 : index
    %c0_29 = arith.constant 0 : index
    %46 = vector.load %arg10[%c0_28, %c0_29] : memref<128x256xbf16, #tpu.memory_space<vmem>>, vector<128x256xbf16>
    %cst_30 = arith.constant dense<0.000000e+00> : vector<8x256xf32>
    %47 = tpu.matmul %45, %46, %cst_30 {dimension_numbers = #tpu.dot_dimension_numbers<[1], [0], [0], [1], [0, 0, 1, 1], [], []>} : vector<8x128xbf16>, vector<128x256xbf16>, vector<8x256xf32> -> vector<8x256xf32>
    %c0_31 = arith.constant 0 : index
    %c0_32 = arith.constant 0 : index
    %48 = vector.load %arg11[%c0_31, %c0_32] : memref<1x256xf32, #tpu.memory_space<vmem>>, vector<1x256xf32>
    %49 = vector.broadcast %48 : vector<1x256xf32> to vector<8x256xf32>
    %50 = arith.addf %47, %49 : vector<8x256xf32>
    %c0_33 = arith.constant 0 : index
    %c0_34 = arith.constant 0 : index
    %51 = vector.load %arg23[%c0_33, %c0_34] : memref<8x256xf32, #tpu.memory_space<vmem>>, vector<8x256xf32>
    tpu.vector_store %arg23[%c0_33, %c0_34], %50 {strides = array<i32>} : memref<8x256xf32, #tpu.memory_space<vmem>>, vector<8x256xf32>,
    %52 = vector.extract_strided_slice %50 {offsets = [0, 0], sizes = [8, 128], strides = [1, 1]} : vector<8x256xf32> to vector<8x128xf32>
    %53 = vector.extract_strided_slice %50 {offsets = [0, 128], sizes = [8, 128], strides = [1, 1]} : vector<8x256xf32> to vector<8x128xf32>
    %cst_35 = arith.constant 5.000000e-01 : f32
    %54 = vector.broadcast %cst_35 : f32 to vector<8x128xf32>
    %55 = arith.mulf %54, %53 : vector<8x128xf32>
    %56 = math.exp %55 : vector<8x128xf32>
    %c0_36 = arith.constant 0 : index
    %c0_37 = arith.constant 0 : index
    %57 = vector.load %arg1[%c0_36, %c0_37] : memref<8x128xf32, #tpu.memory_space<vmem>>, vector<8x128xf32>
    %58 = arith.mulf %56, %57 : vector<8x128xf32>
    %59 = arith.addf %52, %58 : vector<8x128xf32>
    %60 = arith.truncf %59 : vector<8x128xf32> to vector<8x128xbf16>
    %c0_38 = arith.constant 0 : index
    %c0_39 = arith.constant 0 : index
    %61 = vector.load %arg12[%c0_38, %c0_39] : memref<128x128xbf16, #tpu.memory_space<vmem>>, vector<128x128xbf16>
    %cst_40 = arith.constant dense<0.000000e+00> : vector<8x128xf32>
    %62 = tpu.matmul %60, %61, %cst_40 {dimension_numbers = #tpu.dot_dimension_numbers<[1], [0], [0], [1], [0, 0, 1, 1], [], []>} : vector<8x128xbf16>, vector<128x128xbf16>, vector<8x128xf32> -> vector<8x128xf32>
    %c0_41 = arith.constant 0 : index
    %c0_42 = arith.constant 0 : index
    %63 = vector.load %arg13[%c0_41, %c0_42] : memref<1x128xf32, #tpu.memory_space<vmem>>, vector<1x128xf32>
    %64 = vector.broadcast %63 : vector<1x128xf32> to vector<8x128xf32>
    %65 = arith.addf %62, %64 : vector<8x128xf32>
    %cst_43 = arith.constant 0.000000e+00 : f32
    %66 = vector.broadcast %cst_43 : f32 to vector<8x128xf32>
    %67 = arith.cmpf ogt, %65, %66 : vector<8x128xf32>
    %cst_44 = arith.constant 2.000000e-01 : f32
    %68 = vector.broadcast %cst_44 : f32 to vector<8x128xf32>
    %69 = arith.mulf %68, %65 : vector<8x128xf32>
    %70 = arith.select %67, %65, %69 : vector<8x128xi1>, vector<8x128xf32>
    %71 = arith.truncf %70 : vector<8x128xf32> to vector<8x128xbf16>
    %c0_45 = arith.constant 0 : index
    %c0_46 = arith.constant 0 : index
    %72 = vector.load %arg14[%c0_45, %c0_46] : memref<128x128xbf16, #tpu.memory_space<vmem>>, vector<128x128xbf16>
    %cst_47 = arith.constant dense<0.000000e+00> : vector<8x128xf32>
    %73 = tpu.matmul %71, %72, %cst_47 {dimension_numbers = #tpu.dot_dimension_numbers<[1], [0], [0], [1], [0, 0, 1, 1], [], []>} : vector<8x128xbf16>, vector<128x128xbf16>, vector<8x128xf32> -> vector<8x128xf32>
    %c0_48 = arith.constant 0 : index
    %c0_49 = arith.constant 0 : index
    %74 = vector.load %arg15[%c0_48, %c0_49] : memref<1x128xf32, #tpu.memory_space<vmem>>, vector<1x128xf32>
    %75 = vector.broadcast %74 : vector<1x128xf32> to vector<8x128xf32>
    %76 = arith.addf %73, %75 : vector<8x128xf32>
    %cst_50 = arith.constant 0.000000e+00 : f32
    %77 = vector.broadcast %cst_50 : f32 to vector<8x128xf32>
    %78 = arith.cmpf ogt, %76, %77 : vector<8x128xf32>
    %cst_51 = arith.constant 2.000000e-01 : f32
    %79 = vector.broadcast %cst_51 : f32 to vector<8x128xf32>
    %80 = arith.mulf %79, %76 : vector<8x128xf32>
    %81 = arith.select %78, %76, %80 : vector<8x128xi1>, vector<8x128xf32>
    %82 = arith.truncf %81 : vector<8x128xf32> to vector<8x128xbf16>
    %c0_52 = arith.constant 0 : index
    %c0_53 = arith.constant 0 : index
    %83 = vector.load %arg16[%c0_52, %c0_53] : memref<128x256xbf16, #tpu.memory_space<vmem>>, vector<128x256xbf16>
    %cst_54 = arith.constant dense<0.000000e+00> : vector<8x256xf32>
    %84 = tpu.matmul %82, %83, %cst_54 {dimension_numbers = #tpu.dot_dimension_numbers<[1], [0], [0], [1], [0, 0, 1, 1], [], []>} : vector<8x128xbf16>, vector<128x256xbf16>, vector<8x256xf32> -> vector<8x256xf32>
    %c0_55 = arith.constant 0 : index
    %c0_56 = arith.constant 0 : index
    %85 = vector.load %arg17[%c0_55, %c0_56] : memref<1x256xf32, #tpu.memory_space<vmem>>, vector<1x256xf32>
    %86 = vector.broadcast %85 : vector<1x256xf32> to vector<8x256xf32>
    %87 = arith.addf %84, %86 : vector<8x256xf32>
    %cst_57 = arith.constant 0.000000e+00 : f32
    %88 = vector.broadcast %cst_57 : f32 to vector<8x256xf32>
    %89 = arith.cmpf ogt, %87, %88 : vector<8x256xf32>
    %cst_58 = arith.constant 2.000000e-01 : f32
    %90 = vector.broadcast %cst_58 : f32 to vector<8x256xf32>
    %91 = arith.mulf %90, %87 : vector<8x256xf32>
    %92 = arith.select %89, %87, %91 : vector<8x256xi1>, vector<8x256xf32>
    %93 = arith.truncf %92 : vector<8x256xf32> to vector<8x256xbf16>
    %c0_59 = arith.constant 0 : index
    %c0_60 = arith.constant 0 : index
    %94 = vector.load %arg18[%c0_59, %c0_60] : memref<256x512xbf16, #tpu.memory_space<vmem>>, vector<256x512xbf16>
    %cst_61 = arith.constant dense<0.000000e+00> : vector<8x512xf32>
    %95 = tpu.matmul %93, %94, %cst_61 {dimension_numbers = #tpu.dot_dimension_numbers<[1], [0], [0], [1], [0, 0, 1, 1], [], []>} : vector<8x256xbf16>, vector<256x512xbf16>, vector<8x512xf32> -> vector<8x512xf32>
    %c0_62 = arith.constant 0 : index
    %c0_63 = arith.constant 0 : index
    %96 = vector.load %arg19[%c0_62, %c0_63] : memref<1x512xf32, #tpu.memory_space<vmem>>, vector<1x512xf32>
    %97 = vector.broadcast %96 : vector<1x512xf32> to vector<8x512xf32>
    %98 = arith.addf %95, %97 : vector<8x512xf32>
    %cst_64 = arith.constant 0.000000e+00 : f32
    %99 = vector.broadcast %cst_64 : f32 to vector<8x512xf32>
    %100 = arith.cmpf ogt, %98, %99 : vector<8x512xf32>
    %cst_65 = arith.constant 2.000000e-01 : f32
    %101 = vector.broadcast %cst_65 : f32 to vector<8x512xf32>
    %102 = arith.mulf %101, %98 : vector<8x512xf32>
    %103 = arith.select %100, %98, %102 : vector<8x512xi1>, vector<8x512xf32>
    %104 = arith.truncf %103 : vector<8x512xf32> to vector<8x512xbf16>
    %c0_66 = arith.constant 0 : index
    %c0_67 = arith.constant 0 : index
    %105 = vector.load %arg20[%c0_66, %c0_67] : memref<512x256xbf16, #tpu.memory_space<vmem>>, vector<512x256xbf16>
    %cst_68 = arith.constant dense<0.000000e+00> : vector<8x256xf32>
    %106 = tpu.matmul %104, %105, %cst_68 {dimension_numbers = #tpu.dot_dimension_numbers<[1], [0], [0], [1], [0, 0, 1, 1], [], []>} : vector<8x512xbf16>, vector<512x256xbf16>, vector<8x256xf32> -> vector<8x256xf32>
    %c0_69 = arith.constant 0 : index
    %c0_70 = arith.constant 0 : index
    %107 = vector.load %arg21[%c0_69, %c0_70] : memref<1x256xf32, #tpu.memory_space<vmem>>, vector<1x256xf32>
    %108 = vector.broadcast %107 : vector<1x256xf32> to vector<8x256xf32>
    %109 = arith.addf %106, %108 : vector<8x256xf32>
    %cst_71 = arith.constant 0.000000e+00 : f32
    %110 = vector.broadcast %cst_71 : f32 to vector<8x256xf32>
    %111 = arith.subf %110, %109 : vector<8x256xf32>
    %112 = math.exp %111 : vector<8x256xf32>
    %cst_72 = arith.constant 1.000000e+00 : f32
    %113 = vector.broadcast %cst_72 : f32 to vector<8x256xf32>
    %114 = arith.addf %113, %112 : vector<8x256xf32>
    %115 = tpu.reciprocal %114 {approx = true} : vector<8x256xf32> -> vector<8x256xf32>
    %c0_73 = arith.constant 0 : index
    %c0_74 = arith.constant 0 : index
    %116 = vector.load %arg22[%c0_73, %c0_74] : memref<8x256xf32, #tpu.memory_space<vmem>>, vector<8x256xf32>
    tpu.vector_store %arg22[%c0_73, %c0_74], %115 {strides = array<i32>} : memref<8x256xf32, #tpu.memory_space<vmem>>, vector<8x256xf32>,
    return
  }
}

</mosaic_0001>

<llo_original>
// kernel: vae_forward.1
$region0: #{vae_forward.1}
  #allocation0 [shape = 'u32[]', space=smem, size = 0x4, offset = 0x4, fixed_abs, tag = 'smem constant byte address 0x4 - core index']
  #allocation1 [shape = 'u32[144,128]{1,0:T(1,128)}', space=vmem, size = 0x12000, scoped, tag = 'internal scratch']
  %s0 = inlined_call_operand.vmem [shape: f32[8,256], index: 0, kind: input, shape index: {}]
  %s1 = inlined_call_operand.vmem [shape: f32[8,128], index: 1, kind: input, shape index: {}]
  %s2 = inlined_call_operand.hbm [shape: bf16[256,512], index: 2, kind: input, shape index: {}]
  %s3 = inlined_call_operand.hbm [shape: f32[1,512], index: 3, kind: input, shape index: {}]
  %s4 = inlined_call_operand.hbm [shape: bf16[512,256], index: 4, kind: input, shape index: {}]
  %s5 = inlined_call_operand.hbm [shape: f32[1,256], index: 5, kind: input, shape index: {}]
  %s6 = inlined_call_operand.hbm [shape: bf16[256,128], index: 6, kind: input, shape index: {}]
  %s7 = inlined_call_operand.hbm [shape: f32[1,128], index: 7, kind: input, shape index: {}]
  %s8 = inlined_call_operand.hbm [shape: bf16[128,128], index: 8, kind: input, shape index: {}]
  %s9 = inlined_call_operand.hbm [shape: f32[1,128], index: 9, kind: input, shape index: {}]
  %s10 = inlined_call_operand.hbm [shape: bf16[128,256], index: 10, kind: input, shape index: {}]
  %s11 = inlined_call_operand.hbm [shape: f32[1,256], index: 11, kind: input, shape index: {}]
  %s12 = inlined_call_operand.vmem [shape: bf16[128,128], index: 12, kind: input, shape index: {}]
  %s13 = inlined_call_operand.hbm [shape: f32[1,128], index: 13, kind: input, shape index: {}]
  %s14 = inlined_call_operand.hbm [shape: bf16[128,128], index: 14, kind: input, shape index: {}]
  %s15 = inlined_call_operand.hbm [shape: f32[1,128], index: 15, kind: input, shape index: {}]
  %s16 = inlined_call_operand.hbm [shape: bf16[128,256], index: 16, kind: input, shape index: {}]
  %s17 = inlined_call_operand.hbm [shape: f32[1,256], index: 17, kind: input, shape index: {}]
  %s18 = inlined_call_operand.hbm [shape: bf16[256,512], index: 18, kind: input, shape index: {}]
  %s19 = inlined_call_operand.hbm [shape: f32[1,512], index: 19, kind: input, shape index: {}]
  %s20 = inlined_call_operand.hbm [shape: bf16[512,256], index: 20, kind: input, shape index: {}]
  %s21 = inlined_call_operand.hbm [shape: f32[1,256], index: 21, kind: input, shape index: {}]
  %s22 = inlined_call_operand.hbm [shape: f32[8,256], index: 22, kind: output, shape index: {0}]
  %s23 = inlined_call_operand.vmem [shape: f32[8,256], index: 23, kind: output, shape index: {1}]
  %24 = xla_tuple %s22, %s23
  %s25 = sld [smem:[#allocation0]]
  $region182: #{vae_forward.1} parent=0
    _
  %s27 = ssub.s32 1, %s25
  %s28 = scalar_select 0, %s27, %s25
  $region1: #{vae_forward.1} parent=0
    #allocation2 [shape = 'u8[262144]{0}', space=vmem, size = 0x40000, scoped, tag = 'input window, operand 2, single buffered']
    #allocation3 [shape = 's32[1]{0}', space=sflag, size = 0x4, scoped, tag = 'scoped memory for vae_forward.1']
    #allocation4 [shape = 's32[1]{0}', space=sflag, size = 0x4, scoped, tag = 'scoped memory for vae_forward.1']
    #allocation5 [shape = 'u8[2048]{0}', space=vmem, size = 0x800, scoped, tag = 'input window, operand 3, single buffered']
    #allocation6 [shape = 's32[1]{0}', space=sflag, size = 0x4, scoped, tag = 'scoped memory for vae_forward.1']
    #allocation7 [shape = 'u8[262144]{0}', space=vmem, size = 0x40000, scoped, tag = 'input window, operand 4, single buffered']
    #allocation8 [shape = 'u8[1024]{0}', space=vmem, size = 0x400, scoped, tag = 'input window, operand 5, single buffered']
    #allocation9 [shape = 's32[1]{0}', space=sflag, size = 0x4, scoped, tag = 'scoped memory for vae_forward.1']
    #allocation10 [shape = 'u8[65536]{0}', space=vmem, size = 0x10000, scoped, tag = 'input window, operand 6, single buffered']
    #allocation11 [shape = 'u8[512]{0}', space=vmem, size = 0x400, scoped, tag = 'input window, operand 7, single buffered']
    #allocation12 [shape = 's32[1]{0}', space=sflag, size = 0x4, scoped, tag = 'scoped memory for vae_forward.1']
    #allocation13 [shape = 'u8[32768]{0}', space=vmem, size = 0x8000, scoped, tag = 'input window, operand 8, single buffered']
    #allocation14 [shape = 'u8[512]{0}', space=vmem, size = 0x400, scoped, tag = 'input window, operand 9, single buffered']
    #allocation15 [shape = 's32[1]{0}', space=sflag, size = 0x4, scoped, tag = 'scoped memory for vae_forward.1']
    #allocation16 [shape = 'u8[65536]{0}', space=vmem, size = 0x10000, scoped, tag = 'input window, operand 10, single buffered']
    #allocation17 [shape = 'u8[1024]{0}', space=vmem, size = 0x400, scoped, tag = 'input window, operand 11, single buffered']
    #allocation18 [shape = 's32[1]{0}', space=sflag, size = 0x4, scoped, tag = 'scoped memory for vae_forward.1']
    #allocation19 [shape = 'u8[512]{0}', space=vmem, size = 0x400, scoped, tag = 'input window, operand 13, single buffered']
    #allocation20 [shape = 'u8[32768]{0}', space=vmem, size = 0x8000, scoped, tag = 'input window, operand 14, single buffered']
    #allocation21 [shape = 's32[1]{0}', space=sflag, size = 0x4, scoped, tag = 'scoped memory for vae_forward.1']
    #allocation22 [shape = 'u8[512]{0}', space=vmem, size = 0x400, scoped, tag = 'input window, operand 15, single buffered']
    #allocation23 [shape = 'u8[65536]{0}', space=vmem, size = 0x10000, scoped, tag = 'input window, operand 16, single buffered']
    #allocation24 [shape = 's32[1]{0}', space=sflag, size = 0x4, scoped, tag = 'scoped memory for vae_forward.1']
    #allocation25 [shape = 'u8[1024]{0}', space=vmem, size = 0x400, scoped, tag = 'input window, operand 17, single buffered']
    #allocation26 [shape = 'u8[262144]{0}', space=vmem, size = 0x40000, scoped, tag = 'input window, operand 18, single buffered']
    #allocation27 [shape = 's32[1]{0}', space=sflag, size = 0x4, scoped, tag = 'scoped memory for vae_forward.1']
    #allocation28 [shape = 'u8[2048]{0}', space=vmem, size = 0x800, scoped, tag = 'input window, operand 19, single buffered']
    #allocation29 [shape = 'u8[262144]{0}', space=vmem, size = 0x40000, scoped, tag = 'input window, operand 20, single buffered']
    #allocation30 [shape = 's32[1]{0}', space=sflag, size = 0x4, scoped, tag = 'scoped memory for vae_forward.1']
    #allocation31 [shape = 'u8[1024]{0}', space=vmem, size = 0x400, scoped, tag = 'input window, operand 21, single buffered']
    #allocation32 [shape = 'u8[8192]{0}', space=vmem, size = 0x2000, scoped, tag = 'output window, operand 0, single buffered']
    %29 = vsyncpa [#allocation3], 0
    %30 = vsyncpa [#allocation6], 0
    %31 = vsyncpa [#allocation9], 0
    %32 = vsyncpa [#allocation12], 0
    %33 = vsyncpa [#allocation15], 0
    %34 = vsyncpa [#allocation18], 0
    %35 = vsyncpa [#allocation21], 0
    %36 = vsyncpa [#allocation24], 0
    %37 = vsyncpa [#allocation27], 0
    %38 = vsyncpa [#allocation30], 0
    %39 = vsyncpa [#allocation4], 0
    // Predicated region
    $region2: #{vae_forward.1} parent=1 // pred_check
      _
    $region3: #{vae_forward.1} parent=1 // pred_check_branch
      %41 = sbr.rel (0) target = $region5
    $region4: #{vae_forward.1} parent=1 // pred_region
      _
    $region5: #{vae_forward.1} parent=1 // pred_fallthru
      _
    // Predicated region
    $region6: #{vae_forward.1} parent=1 // pred_check
      _
    $region7: #{vae_forward.1} parent=1 // pred_check_branch
      %43 = sbr.rel (0) target = $region9
    $region8: #{vae_forward.1} parent=1 // pred_region
      _
    $region9: #{vae_forward.1} parent=1 // pred_fallthru
      _
    // Predicated region
    $region10: #{vae_forward.1} parent=1 // pred_check
      _
    $region11: #{vae_forward.1} parent=1 // pred_check_branch
      %45 = sbr.rel (0) target = $region13
    $region12: #{vae_forward.1} parent=1 // pred_region
      %s47 = ssub.s32 8192, 8192
      %48 = vsyncadd [#allocation3], %s47
      %s49 = sshll.u32 [#allocation2], 4
      %s50 = int_to_ptr.vmem [resolvable:$true] %s49
      %55 = dma.hbm_to_vmem [thread:$0]  %s2, 8192, %s50, [#allocation3], 256, 256, 16
    $region13: #{vae_forward.1} parent=1 // pred_fallthru
      _
    // Predicated region
    $region14: #{vae_forward.1} parent=1 // pred_check
      _
    $region15: #{vae_forward.1} parent=1 // pred_check_branch
      %57 = sbr.rel (0) target = $region17
    $region16: #{vae_forward.1} parent=1 // pred_region
      %s59 = ssub.s32 64, 64
      %60 = vsyncadd [#allocation6], %s59
      %s62 = sshll.u32 [#allocation5], 4
      %s63 = int_to_ptr.vmem [resolvable:$true] %s62
      %65 = dma.hbm_to_vmem [thread:$0]  %s3, 64, %s63, [#allocation6]
    $region17: #{vae_forward.1} parent=1 // pred_fallthru
      _
    // Predicated region
    $region18: #{vae_forward.1} parent=1 // pred_check
      _
    $region19: #{vae_forward.1} parent=1 // pred_check_branch
      %67 = sbr.rel (0) target = $region21
    $region20: #{vae_forward.1} parent=1 // pred_region
      %s69 = ssub.s32 8192, 8192
      %70 = vsyncadd [#allocation6], %s69
      %s71 = sshll.u32 [#allocation7], 4
      %s72 = int_to_ptr.vmem [resolvable:$true] %s71
      %77 = dma.hbm_to_vmem [thread:$0]  %s4, 8192, %s72, [#allocation6], 128, 128, 8
    $region21: #{vae_forward.1} parent=1 // pred_fallthru
      _
    // Predicated region
    $region22: #{vae_forward.1} parent=1 // pred_check
      _
    $region23: #{vae_forward.1} parent=1 // pred_check_branch
      %79 = sbr.rel (0) target = $region25
    $region24: #{vae_forward.1} parent=1 // pred_region
      %s81 = ssub.s32 32, 32
      %82 = vsyncadd [#allocation9], %s81
      %s84 = sshll.u32 [#allocation8], 4
      %s85 = int_to_ptr.vmem [resolvable:$true] %s84
      %87 = dma.hbm_to_vmem [thread:$0]  %s5, 32, %s85, [#allocation9]
    $region25: #{vae_forward.1} parent=1 // pred_fallthru
      _
    // Predicated region
    $region26: #{vae_forward.1} parent=1 // pred_check
      _
    $region27: #{vae_forward.1} parent=1 // pred_check_branch
      %89 = sbr.rel (0) target = $region29
    $region28: #{vae_forward.1} parent=1 // pred_region
      %s91 = ssub.s32 2048, 2048
      %92 = vsyncadd [#allocation9], %s91
      %s93 = sshll.u32 [#allocation10], 4
      %s94 = int_to_ptr.vmem [resolvable:$true] %s93
      %99 = dma.hbm_to_vmem [thread:$0]  %s6, 2048, %s94, [#allocation9], 64, 64, 4
    $region29: #{vae_forward.1} parent=1 // pred_fallthru
      _
    // Predicated region
    $region30: #{vae_forward.1} parent=1 // pred_check
      _
    $region31: #{vae_forward.1} parent=1 // pred_check_branch
      %101 = sbr.rel (0) target = $region33
    $region32: #{vae_forward.1} parent=1 // pred_region
      %s103 = ssub.s32 16, 16
      %104 = vsyncadd [#allocation12], %s103
      %s106 = sshll.u32 [#allocation11], 4
      %s107 = int_to_ptr.vmem [resolvable:$true] %s106
      %109 = dma.hbm_to_vmem [thread:$0]  %s7, 16, %s107, [#allocation12]
    $region33: #{vae_forward.1} parent=1 // pred_fallthru
      _
    // Predicated region
    $region34: #{vae_forward.1} parent=1 // pred_check
      _
    $region35: #{vae_forward.1} parent=1 // pred_check_branch
      %111 = sbr.rel (0) target = $region37
    $region36: #{vae_forward.1} parent=1 // pred_region
      %s113 = ssub.s32 1024, 1024
      %114 = vsyncadd [#allocation12], %s113
      %s115 = sshll.u32 [#allocation13], 4
      %s116 = int_to_ptr.vmem [resolvable:$true] %s115
      %121 = dma.hbm_to_vmem [thread:$0]  %s8, 1024, %s116, [#allocation12], 64, 64, 4
    $region37: #{vae_forward.1} parent=1 // pred_fallthru
      _
    // Predicated region
    $region38: #{vae_forward.1} parent=1 // pred_check
      _
    $region39: #{vae_forward.1} parent=1 // pred_check_branch
      %123 = sbr.rel (0) target = $region41
    $region40: #{vae_forward.1} parent=1 // pred_region
      %s125 = ssub.s32 16, 16
      %126 = vsyncadd [#allocation15], %s125
      %s128 = sshll.u32 [#allocation14], 4
      %s129 = int_to_ptr.vmem [resolvable:$true] %s128
      %131 = dma.hbm_to_vmem [thread:$0]  %s9, 16, %s129, [#allocation15]
    $region41: #{vae_forward.1} parent=1 // pred_fallthru
      _
    // Predicated region
    $region42: #{vae_forward.1} parent=1 // pred_check
      _
    $region43: #{vae_forward.1} parent=1 // pred_check_branch
      %133 = sbr.rel (0) target = $region45
    $region44: #{vae_forward.1} parent=1 // pred_region
      %s135 = ssub.s32 2048, 2048
      %136 = vsyncadd [#allocation15], %s135
      %s137 = sshll.u32 [#allocation16], 4
      %s138 = int_to_ptr.vmem [resolvable:$true] %s137
      %143 = dma.hbm_to_vmem [thread:$0]  %s10, 2048, %s138, [#allocation15], 128, 128, 8
    $region45: #{vae_forward.1} parent=1 // pred_fallthru
      _
    // Predicated region
    $region46: #{vae_forward.1} parent=1 // pred_check
      _
    $region47: #{vae_forward.1} parent=1 // pred_check_branch
      %145 = sbr.rel (0) target = $region49
    $region48: #{vae_forward.1} parent=1 // pred_region
      %s147 = ssub.s32 32, 32
      %148 = vsyncadd [#allocation18], %s147
      %s150 = sshll.u32 [#allocation17], 4
      %s151 = int_to_ptr.vmem [resolvable:$true] %s150
      %153 = dma.hbm_to_vmem [thread:$0]  %s11, 32, %s151, [#allocation18]
    $region49: #{vae_forward.1} parent=1 // pred_fallthru
      _
    // Predicated region
    $region50: #{vae_forward.1} parent=1 // pred_check
      _
    $region51: #{vae_forward.1} parent=1 // pred_check_branch
      %155 = sbr.rel (0) target = $region53
    $region52: #{vae_forward.1} parent=1 // pred_region
      _
    $region53: #{vae_forward.1} parent=1 // pred_fallthru
      _
    // Predicated region
    $region54: #{vae_forward.1} parent=1 // pred_check
      _
    $region55: #{vae_forward.1} parent=1 // pred_check_branch
      %157 = sbr.rel (0) target = $region57
    $region56: #{vae_forward.1} parent=1 // pred_region
      %s159 = ssub.s32 16, 16
      %160 = vsyncadd [#allocation18], %s159
      %s162 = sshll.u32 [#allocation19], 4
      %s163 = int_to_ptr.vmem [resolvable:$true] %s162
      %165 = dma.hbm_to_vmem [thread:$0]  %s13, 16, %s163, [#allocation18]
    $region57: #{vae_forward.1} parent=1 // pred_fallthru
      _
    // Predicated region
    $region58: #{vae_forward.1} parent=1 // pred_check
      _
    $region59: #{vae_forward.1} parent=1 // pred_check_branch
      %167 = sbr.rel (0) target = $region61
    $region60: #{vae_forward.1} parent=1 // pred_region
      %s169 = ssub.s32 1024, 1024
      %170 = vsyncadd [#allocation21], %s169
      %s171 = sshll.u32 [#allocation20], 4
      %s172 = int_to_ptr.vmem [resolvable:$true] %s171
      %177 = dma.hbm_to_vmem [thread:$0]  %s14, 1024, %s172, [#allocation21], 64, 64, 4
    $region61: #{vae_forward.1} parent=1 // pred_fallthru
      _
    // Predicated region
    $region62: #{vae_forward.1} parent=1 // pred_check
      _
    $region63: #{vae_forward.1} parent=1 // pred_check_branch
      %179 = sbr.rel (0) target = $region65
    $region64: #{vae_forward.1} parent=1 // pred_region
      %s181 = ssub.s32 16, 16
      %182 = vsyncadd [#allocation21], %s181
      %s184 = sshll.u32 [#allocation22], 4
      %s185 = int_to_ptr.vmem [resolvable:$true] %s184
      %187 = dma.hbm_to_vmem [thread:$0]  %s15, 16, %s185, [#allocation21]
    $region65: #{vae_forward.1} parent=1 // pred_fallthru
      _
    // Predicated region
    $region66: #{vae_forward.1} parent=1 // pred_check
      _
    $region67: #{vae_forward.1} parent=1 // pred_check_branch
      %189 = sbr.rel (0) target = $region69
    $region68: #{vae_forward.1} parent=1 // pred_region
      %s191 = ssub.s32 2048, 2048
      %192 = vsyncadd [#allocation24], %s191
      %s193 = sshll.u32 [#allocation23], 4
      %s194 = int_to_ptr.vmem [resolvable:$true] %s193
      %199 = dma.hbm_to_vmem [thread:$0]  %s16, 2048, %s194, [#allocation24], 128, 128, 8
    $region69: #{vae_forward.1} parent=1 // pred_fallthru
      _
    // Predicated region
    $region70: #{vae_forward.1} parent=1 // pred_check
      _
    $region71: #{vae_forward.1} parent=1 // pred_check_branch
      %201 = sbr.rel (0) target = $region73
    $region72: #{vae_forward.1} parent=1 // pred_region
      %s203 = ssub.s32 32, 32
      %204 = vsyncadd [#allocation24], %s203
      %s206 = sshll.u32 [#allocation25], 4
      %s207 = int_to_ptr.vmem [resolvable:$true] %s206
      %209 = dma.hbm_to_vmem [thread:$0]  %s17, 32, %s207, [#allocation24]
    $region73: #{vae_forward.1} parent=1 // pred_fallthru
      _
    // Predicated region
    $region74: #{vae_forward.1} parent=1 // pred_check
      _
    $region75: #{vae_forward.1} parent=1 // pred_check_branch
      %211 = sbr.rel (0) target = $region77
    $region76: #{vae_forward.1} parent=1 // pred_region
      %s213 = ssub.s32 8192, 8192
      %214 = vsyncadd [#allocation27], %s213
      %s215 = sshll.u32 [#allocation26], 4
      %s216 = int_to_ptr.vmem [resolvable:$true] %s215
      %221 = dma.hbm_to_vmem [thread:$0]  %s18, 8192, %s216, [#allocation27], 256, 256, 16
    $region77: #{vae_forward.1} parent=1 // pred_fallthru
      _
    // Predicated region
    $region78: #{vae_forward.1} parent=1 // pred_check
      _
    $region79: #{vae_forward.1} parent=1 // pred_check_branch
      %223 = sbr.rel (0) target = $region81
    $region80: #{vae_forward.1} parent=1 // pred_region
      %s225 = ssub.s32 64, 64
      %226 = vsyncadd [#allocation27], %s225
      %s228 = sshll.u32 [#allocation28], 4
      %s229 = int_to_ptr.vmem [resolvable:$true] %s228
      %231 = dma.hbm_to_vmem [thread:$0]  %s19, 64, %s229, [#allocation27]
    $region81: #{vae_forward.1} parent=1 // pred_fallthru
      _
    // Predicated region
    $region82: #{vae_forward.1} parent=1 // pred_check
      _
    $region83: #{vae_forward.1} parent=1 // pred_check_branch
      %233 = sbr.rel (0) target = $region85
    $region84: #{vae_forward.1} parent=1 // pred_region
      %s235 = ssub.s32 8192, 8192
      %236 = vsyncadd [#allocation30], %s235
      %s237 = sshll.u32 [#allocation29], 4
      %s238 = int_to_ptr.vmem [resolvable:$true] %s237
      %243 = dma.hbm_to_vmem [thread:$0]  %s20, 8192, %s238, [#allocation30], 128, 128, 8
    $region85: #{vae_forward.1} parent=1 // pred_fallthru
      _
    // Predicated region
    $region86: #{vae_forward.1} parent=1 // pred_check
      _
    $region87: #{vae_forward.1} parent=1 // pred_check_branch
      %245 = sbr.rel (0) target = $region89
    $region88: #{vae_forward.1} parent=1 // pred_region
      %s247 = ssub.s32 32, 32
      %248 = vsyncadd [#allocation30], %s247
      %s250 = sshll.u32 [#allocation31], 4
      %s251 = int_to_ptr.vmem [resolvable:$true] %s250
      %253 = dma.hbm_to_vmem [thread:$0]  %s21, 32, %s251, [#allocation30]
    $region89: #{vae_forward.1} parent=1 // pred_fallthru
      _
    // Predicated region
    $region90: #{vae_forward.1} parent=1 // pred_check
      _
    $region91: #{vae_forward.1} parent=1 // pred_check_branch
      %255 = sbr.rel (0) target = $region93
    $region92: #{vae_forward.1} parent=1 // pred_region
      %256 = dma.done [#allocation3], 8192
    $region93: #{vae_forward.1} parent=1 // pred_fallthru
      _
    // Predicated region
    $region94: #{vae_forward.1} parent=1 // pred_check
      _
    $region95: #{vae_forward.1} parent=1 // pred_check_branch
      %258 = sbr.rel (0) target = $region97
    $region96: #{vae_forward.1} parent=1 // pred_region
      %259 = dma.done [#allocation6], 64
    $region97: #{vae_forward.1} parent=1 // pred_fallthru
      _
    // Predicated region
    $region98: #{vae_forward.1} parent=1 // pred_check
      _
    $region99: #{vae_forward.1} parent=1 // pred_check_branch
      %261 = sbr.rel (0) target = $region101
    $region100: #{vae_forward.1} parent=1 // pred_region
      %262 = dma.done [#allocation6], 8192
    $region101: #{vae_forward.1} parent=1 // pred_fallthru
      _
    // Predicated region
    $region102: #{vae_forward.1} parent=1 // pred_check
      _
    $region103: #{vae_forward.1} parent=1 // pred_check_branch
      %264 = sbr.rel (0) target = $region105
    $region104: #{vae_forward.1} parent=1 // pred_region
      %265 = dma.done [#allocation9], 32
    $region105: #{vae_forward.1} parent=1 // pred_fallthru
      _
    // Predicated region
    $region106: #{vae_forward.1} parent=1 // pred_check
      _
    $region107: #{vae_forward.1} parent=1 // pred_check_branch
      %267 = sbr.rel (0) target = $region109
    $region108: #{vae_forward.1} parent=1 // pred_region
      %268 = dma.done [#allocation9], 2048
    $region109: #{vae_forward.1} parent=1 // pred_fallthru
      _
    // Predicated region
    $region110: #{vae_forward.1} parent=1 // pred_check
      _
    $region111: #{vae_forward.1} parent=1 // pred_check_branch
      %270 = sbr.rel (0) target = $region113
    $region112: #{vae_forward.1} parent=1 // pred_region
      %271 = dma.done [#allocation12], 16
    $region113: #{vae_forward.1} parent=1 // pred_fallthru
      _
    // Predicated region
    $region114: #{vae_forward.1} parent=1 // pred_check
      _
    $region115: #{vae_forward.1} parent=1 // pred_check_branch
      %273 = sbr.rel (0) target = $region117
    $region116: #{vae_forward.1} parent=1 // pred_region
      %274 = dma.done [#allocation12], 1024
    $region117: #{vae_forward.1} parent=1 // pred_fallthru
      _
    // Predicated region
    $region118: #{vae_forward.1} parent=1 // pred_check
      _
    $region119: #{vae_forward.1} parent=1 // pred_check_branch
      %276 = sbr.rel (0) target = $region121
    $region120: #{vae_forward.1} parent=1 // pred_region
      %277 = dma.done [#allocation15], 16
    $region121: #{vae_forward.1} parent=1 // pred_fallthru
      _
    // Predicated region
    $region122: #{vae_forward.1} parent=1 // pred_check
      _
    $region123: #{vae_forward.1} parent=1 // pred_check_branch
      %279 = sbr.rel (0) target = $region125
    $region124: #{vae_forward.1} parent=1 // pred_region
      %280 = dma.done [#allocation15], 2048
    $region125: #{vae_forward.1} parent=1 // pred_fallthru
      _
    // Predicated region
    $region126: #{vae_forward.1} parent=1 // pred_check
      _
    $region127: #{vae_forward.1} parent=1 // pred_check_branch
      %282 = sbr.rel (0) target = $region129
    $region128: #{vae_forward.1} parent=1 // pred_region
      %283 = dma.done [#allocation18], 32
    $region129: #{vae_forward.1} parent=1 // pred_fallthru
      _
    // Predicated region
    $region130: #{vae_forward.1} parent=1 // pred_check
      _
    $region131: #{vae_forward.1} parent=1 // pred_check_branch
      %285 = sbr.rel (0) target = $region133
    $region132: #{vae_forward.1} parent=1 // pred_region
      %286 = dma.done [#allocation18], 16
    $region133: #{vae_forward.1} parent=1 // pred_fallthru
      _
    // Predicated region
    $region134: #{vae_forward.1} parent=1 // pred_check
      _
    $region135: #{vae_forward.1} parent=1 // pred_check_branch
      %288 = sbr.rel (0) target = $region137
    $region136: #{vae_forward.1} parent=1 // pred_region
      %289 = dma.done [#allocation21], 1024
    $region137: #{vae_forward.1} parent=1 // pred_fallthru
      _
    // Predicated region
    $region138: #{vae_forward.1} parent=1 // pred_check
      _
    $region139: #{vae_forward.1} parent=1 // pred_check_branch
      %291 = sbr.rel (0) target = $region141
    $region140: #{vae_forward.1} parent=1 // pred_region
      %292 = dma.done [#allocation21], 16
    $region141: #{vae_forward.1} parent=1 // pred_fallthru
      _
    // Predicated region
    $region142: #{vae_forward.1} parent=1 // pred_check
      _
    $region143: #{vae_forward.1} parent=1 // pred_check_branch
      %294 = sbr.rel (0) target = $region145
    $region144: #{vae_forward.1} parent=1 // pred_region
      %295 = dma.done [#allocation24], 2048
    $region145: #{vae_forward.1} parent=1 // pred_fallthru
      _
    // Predicated region
    $region146: #{vae_forward.1} parent=1 // pred_check
      _
    $region147: #{vae_forward.1} parent=1 // pred_check_branch
      %297 = sbr.rel (0) target = $region149
    $region148: #{vae_forward.1} parent=1 // pred_region
      %298 = dma.done [#allocation24], 32
    $region149: #{vae_forward.1} parent=1 // pred_fallthru
      _
    // Predicated region
    $region150: #{vae_forward.1} parent=1 // pred_check
      _
    $region151: #{vae_forward.1} parent=1 // pred_check_branch
      %300 = sbr.rel (0) target = $region153
    $region152: #{vae_forward.1} parent=1 // pred_region
      %301 = dma.done [#allocation27], 8192
    $region153: #{vae_forward.1} parent=1 // pred_fallthru
      _
    // Predicated region
    $region154: #{vae_forward.1} parent=1 // pred_check
      _
    $region155: #{vae_forward.1} parent=1 // pred_check_branch
      %303 = sbr.rel (0) target = $region157
    $region156: #{vae_forward.1} parent=1 // pred_region
      %304 = dma.done [#allocation27], 64
    $region157: #{vae_forward.1} parent=1 // pred_fallthru
      _
    // Predicated region
    $region158: #{vae_forward.1} parent=1 // pred_check
      _
    $region159: #{vae_forward.1} parent=1 // pred_check_branch
      %306 = sbr.rel (0) target = $region161
    $region160: #{vae_forward.1} parent=1 // pred_region
      %307 = dma.done [#allocation30], 8192
    $region161: #{vae_forward.1} parent=1 // pred_fallthru
      _
    // Predicated region
    $region162: #{vae_forward.1} parent=1 // pred_check
      _
    $region163: #{vae_forward.1} parent=1 // pred_check_branch
      %309 = sbr.rel (0) target = $region165
    $region164: #{vae_forward.1} parent=1 // pred_region
      %310 = dma.done [#allocation30], 32
    $region165: #{vae_forward.1} parent=1 // pred_fallthru
      _
    %v312 = vld [vmem:[%s0] sm:$0xff]
    %v313 = vld [vmem:[%s0 + $0x8] sm:$0xff]
    %v314 = vpack.c.bf16 %v312, %v312
    %v315 = vpack.c.bf16 %v313, %v313
    %v316 = vld [vmem:[#allocation2] sm:$0xff]
    %v317 = vld [vmem:[#allocation2 + $0x8] sm:$0xff]
    %v318 = vld [vmem:[#allocation2 + $0x10] sm:$0xff]
    %v319 = vld [vmem:[#allocation2 + $0x18] sm:$0xff]
    %v320 = vld [vmem:[#allocation2 + $0x20] sm:$0xff]
    %v321 = vld [vmem:[#allocation2 + $0x28] sm:$0xff]
    %v322 = vld [vmem:[#allocation2 + $0x30] sm:$0xff]
    %v323 = vld [vmem:[#allocation2 + $0x38] sm:$0xff]
    %v324 = vld [vmem:[#allocation2 + $0x40] sm:$0xff]
    %v325 = vld [vmem:[#allocation2 + $0x48] sm:$0xff]
    %v326 = vld [vmem:[#allocation2 + $0x50] sm:$0xff]
    %v327 = vld [vmem:[#allocation2 + $0x58] sm:$0xff]
    %v328 = vld [vmem:[#allocation2 + $0x60] sm:$0xff]
    %v329 = vld [vmem:[#allocation2 + $0x68] sm:$0xff]
    %v330 = vld [vmem:[#allocation2 + $0x70] sm:$0xff]
    %v331 = vld [vmem:[#allocation2 + $0x78] sm:$0xff]
    %v332 = vld [vmem:[#allocation2 + $0x80] sm:$0xff]
    %v333 = vld [vmem:[#allocation2 + $0x88] sm:$0xff]
    %v334 = vld [vmem:[#allocation2 + $0x90] sm:$0xff]
    %v335 = vld [vmem:[#allocation2 + $0x98] sm:$0xff]
    %v336 = vld [vmem:[#allocation2 + $0xa0] sm:$0xff]
    %v337 = vld [vmem:[#allocation2 + $0xa8] sm:$0xff]
    %v338 = vld [vmem:[#allocation2 + $0xb0] sm:$0xff]
    %v339 = vld [vmem:[#allocation2 + $0xb8] sm:$0xff]
    %v340 = vld [vmem:[#allocation2 + $0xc0] sm:$0xff]
    %v341 = vld [vmem:[#allocation2 + $0xc8] sm:$0xff]
    %v342 = vld [vmem:[#allocation2 + $0xd0] sm:$0xff]
    %v343 = vld [vmem:[#allocation2 + $0xd8] sm:$0xff]
    %v344 = vld [vmem:[#allocation2 + $0xe0] sm:$0xff]
    %v345 = vld [vmem:[#allocation2 + $0xe8] sm:$0xff]
    %v346 = vld [vmem:[#allocation2 + $0xf0] sm:$0xff]
    %v347 = vld [vmem:[#allocation2 + $0xf8] sm:$0xff]
    %v348 = vld [vmem:[#allocation2 + $0x100] sm:$0xff]
    %v349 = vld [vmem:[#allocation2 + $0x108] sm:$0xff]
    %v350 = vld [vmem:[#allocation2 + $0x110] sm:$0xff]
    %v351 = vld [vmem:[#allocation2 + $0x118] sm:$0xff]
    %v352 = vld [vmem:[#allocation2 + $0x120] sm:$0xff]
    %v353 = vld [vmem:[#allocation2 + $0x128] sm:$0xff]
    %v354 = vld [vmem:[#allocation2 + $0x130] sm:$0xff]
    %v355 = vld [vmem:[#allocation2 + $0x138] sm:$0xff]
    %v356 = vld [vmem:[#allocation2 + $0x140] sm:$0xff]
    %v357 = vld [vmem:[#allocation2 + $0x148] sm:$0xff]
    %v358 = vld [vmem:[#allocation2 + $0x150] sm:$0xff]
    %v359 = vld [vmem:[#allocation2 + $0x158] sm:$0xff]
    %v360 = vld [vmem:[#allocation2 + $0x160] sm:$0xff]
    %v361 = vld [vmem:[#allocation2 + $0x168] sm:$0xff]
    %v362 = vld [vmem:[#allocation2 + $0x170] sm:$0xff]
    %v363 = vld [vmem:[#allocation2 + $0x178] sm:$0xff]
    %v364 = vld [vmem:[#allocation2 + $0x180] sm:$0xff]
    %v365 = vld [vmem:[#allocation2 + $0x188] sm:$0xff]
    %v366 = vld [vmem:[#allocation2 + $0x190] sm:$0xff]
    %v367 = vld [vmem:[#allocation2 + $0x198] sm:$0xff]
    %v368 = vld [vmem:[#allocation2 + $0x1a0] sm:$0xff]
    %v369 = vld [vmem:[#allocation2 + $0x1a8] sm:$0xff]
    %v370 = vld [vmem:[#allocation2 + $0x1b0] sm:$0xff]
    %v371 = vld [vmem:[#allocation2 + $0x1b8] sm:$0xff]
    %v372 = vld [vmem:[#allocation2 + $0x1c0] sm:$0xff]
    %v373 = vld [vmem:[#allocation2 + $0x1c8] sm:$0xff]
    %v374 = vld [vmem:[#allocation2 + $0x1d0] sm:$0xff]
    %v375 = vld [vmem:[#allocation2 + $0x1d8] sm:$0xff]
    %v376 = vld [vmem:[#allocation2 + $0x1e0] sm:$0xff]
    %v377 = vld [vmem:[#allocation2 + $0x1e8] sm:$0xff]
    %v378 = vld [vmem:[#allocation2 + $0x1f0] sm:$0xff]
    %v379 = vld [vmem:[#allocation2 + $0x1f8] sm:$0xff]
    %v380 = vld [vmem:[#allocation5] sm:$0xf]
    %v382 = vlaneseq
    %v383 = vshrl.u32 %v382, 7
    %v384 = vsub.s32 0, %v383
    %v385 = vrot.slane %v380, %v384
    %v386 = vlaneseq
    %v387 = vshrl.u32 %v386, 7
    %v388 = vsub.s32 1, %v387
    %v389 = vrot.slane %v380, %v388
    %v390 = vlaneseq
    %v391 = vshrl.u32 %v390, 7
    %v392 = vsub.s32 2, %v391
    %v393 = vrot.slane %v380, %v392
    %v394 = vlaneseq
    %v395 = vshrl.u32 %v394, 7
    %v396 = vsub.s32 3, %v395
    %v397 = vrot.slane %v380, %v396
    %v466 = vunpack.c.l.b16 %v316
    %v467 = vunpack.c.h.b16 %v316
    %v468 = vunpack.c.l.b16 %v317
    %v469 = vunpack.c.h.b16 %v317
    %v470 = vunpack.c.l.b16 %v318
    %v471 = vunpack.c.h.b16 %v318
    %v472 = vunpack.c.l.b16 %v319
    %v473 = vunpack.c.h.b16 %v319
    %v474 = vunpack.c.l.b16 %v320
    %v475 = vunpack.c.h.b16 %v320
    %v476 = vunpack.c.l.b16 %v321
    %v477 = vunpack.c.h.b16 %v321
    %v478 = vunpack.c.l.b16 %v322
    %v479 = vunpack.c.h.b16 %v322
    %v480 = vunpack.c.l.b16 %v323
    %v481 = vunpack.c.h.b16 %v323
    %v482 = vunpack.c.l.b16 %v324
    %v483 = vunpack.c.h.b16 %v324
    %v484 = vunpack.c.l.b16 %v325
    %v485 = vunpack.c.h.b16 %v325
    %v486 = vunpack.c.l.b16 %v326
    %v487 = vunpack.c.h.b16 %v326
    %v488 = vunpack.c.l.b16 %v327
    %v489 = vunpack.c.h.b16 %v327
    %v490 = vunpack.c.l.b16 %v328
    %v491 = vunpack.c.h.b16 %v328
    %v492 = vunpack.c.l.b16 %v329
    %v493 = vunpack.c.h.b16 %v329
    %v494 = vunpack.c.l.b16 %v330
    %v495 = vunpack.c.h.b16 %v330
    %v496 = vunpack.c.l.b16 %v331
    %v497 = vunpack.c.h.b16 %v331
    %v498 = vunpack.c.l.b16 %v332
    %v499 = vunpack.c.h.b16 %v332
    %v500 = vunpack.c.l.b16 %v333
    %v501 = vunpack.c.h.b16 %v333
    %v502 = vunpack.c.l.b16 %v334
    %v503 = vunpack.c.h.b16 %v334
    %v504 = vunpack.c.l.b16 %v335
    %v505 = vunpack.c.h.b16 %v335
    %v506 = vunpack.c.l.b16 %v336
    %v507 = vunpack.c.h.b16 %v336
    %v508 = vunpack.c.l.b16 %v337
    %v509 = vunpack.c.h.b16 %v337
    %v510 = vunpack.c.l.b16 %v338
    %v511 = vunpack.c.h.b16 %v338
    %v512 = vunpack.c.l.b16 %v339
    %v513 = vunpack.c.h.b16 %v339
    %v514 = vunpack.c.l.b16 %v340
    %v515 = vunpack.c.h.b16 %v340
    %v516 = vunpack.c.l.b16 %v341
    %v517 = vunpack.c.h.b16 %v341
    %v518 = vunpack.c.l.b16 %v342
    %v519 = vunpack.c.h.b16 %v342
    %v520 = vunpack.c.l.b16 %v343
    %v521 = vunpack.c.h.b16 %v343
    %v522 = vunpack.c.l.b16 %v344
    %v523 = vunpack.c.h.b16 %v344
    %v524 = vunpack.c.l.b16 %v345
    %v525 = vunpack.c.h.b16 %v345
    %v526 = vunpack.c.l.b16 %v346
    %v527 = vunpack.c.h.b16 %v346
    %v528 = vunpack.c.l.b16 %v347
    %v529 = vunpack.c.h.b16 %v347
    %v530 = vunpack.c.l.b16 %v348
    %v531 = vunpack.c.h.b16 %v348
    %v532 = vunpack.c.l.b16 %v349
    %v533 = vunpack.c.h.b16 %v349
    %v534 = vunpack.c.l.b16 %v350
    %v535 = vunpack.c.h.b16 %v350
    %v536 = vunpack.c.l.b16 %v351
    %v537 = vunpack.c.h.b16 %v351
    %v538 = vunpack.c.l.b16 %v352
    %v539 = vunpack.c.h.b16 %v352
    %v540 = vunpack.c.l.b16 %v353
    %v541 = vunpack.c.h.b16 %v353
    %v542 = vunpack.c.l.b16 %v354
    %v543 = vunpack.c.h.b16 %v354
    %v544 = vunpack.c.l.b16 %v355
    %v545 = vunpack.c.h.b16 %v355
    %v546 = vunpack.c.l.b16 %v356
    %v547 = vunpack.c.h.b16 %v356
    %v548 = vunpack.c.l.b16 %v357
    %v549 = vunpack.c.h.b16 %v357
    %v550 = vunpack.c.l.b16 %v358
    %v551 = vunpack.c.h.b16 %v358
    %v552 = vunpack.c.l.b16 %v359
    %v553 = vunpack.c.h.b16 %v359
    %v554 = vunpack.c.l.b16 %v360
    %v555 = vunpack.c.h.b16 %v360
    %v556 = vunpack.c.l.b16 %v361
    %v557 = vunpack.c.h.b16 %v361
    %v558 = vunpack.c.l.b16 %v362
    %v559 = vunpack.c.h.b16 %v362
    %v560 = vunpack.c.l.b16 %v363
    %v561 = vunpack.c.h.b16 %v363
    %v562 = vunpack.c.l.b16 %v364
    %v563 = vunpack.c.h.b16 %v364
    %v564 = vunpack.c.l.b16 %v365
    %v565 = vunpack.c.h.b16 %v365
    %v566 = vunpack.c.l.b16 %v366
    %v567 = vunpack.c.h.b16 %v366
    %v568 = vunpack.c.l.b16 %v367
    %v569 = vunpack.c.h.b16 %v367
    %v570 = vunpack.c.l.b16 %v368
    %v571 = vunpack.c.h.b16 %v368
    %v572 = vunpack.c.l.b16 %v369
    %v573 = vunpack.c.h.b16 %v369
    %v574 = vunpack.c.l.b16 %v370
    %v575 = vunpack.c.h.b16 %v370
    %v576 = vunpack.c.l.b16 %v371
    %v577 = vunpack.c.h.b16 %v371
    %v578 = vunpack.c.l.b16 %v372
    %v579 = vunpack.c.h.b16 %v372
    %v580 = vunpack.c.l.b16 %v373
    %v581 = vunpack.c.h.b16 %v373
    %v582 = vunpack.c.l.b16 %v374
    %v583 = vunpack.c.h.b16 %v374
    %v584 = vunpack.c.l.b16 %v375
    %v585 = vunpack.c.h.b16 %v375
    %v586 = vunpack.c.l.b16 %v376
    %v587 = vunpack.c.h.b16 %v376
    %v588 = vunpack.c.l.b16 %v377
    %v589 = vunpack.c.h.b16 %v377
    %v590 = vunpack.c.l.b16 %v378
    %v591 = vunpack.c.h.b16 %v378
    %v592 = vunpack.c.l.b16 %v379
    %v593 = vunpack.c.h.b16 %v379
    %v594 = vpack.c.b16 %v470, %v466
    %v595 = vpack.c.b16 %v471, %v467
    %v596 = vpack.c.b16 %v472, %v468
    %v597 = vpack.c.b16 %v473, %v469
    %v598 = vpack.c.b16 %v478, %v474
    %v599 = vpack.c.b16 %v479, %v475
    %v600 = vpack.c.b16 %v480, %v476
    %v601 = vpack.c.b16 %v481, %v477
    %v602 = vpack.c.b16 %v486, %v482
    %v603 = vpack.c.b16 %v487, %v483
    %v604 = vpack.c.b16 %v488, %v484
    %v605 = vpack.c.b16 %v489, %v485
    %v606 = vpack.c.b16 %v494, %v490
    %v607 = vpack.c.b16 %v495, %v491
    %v608 = vpack.c.b16 %v496, %v492
    %v609 = vpack.c.b16 %v497, %v493
    %v610 = vpack.c.b16 %v502, %v498
    %v611 = vpack.c.b16 %v503, %v499
    %v612 = vpack.c.b16 %v504, %v500
    %v613 = vpack.c.b16 %v505, %v501
    %v614 = vpack.c.b16 %v510, %v506
    %v615 = vpack.c.b16 %v511, %v507
    %v616 = vpack.c.b16 %v512, %v508
    %v617 = vpack.c.b16 %v513, %v509
    %v618 = vpack.c.b16 %v518, %v514
    %v619 = vpack.c.b16 %v519, %v515
    %v620 = vpack.c.b16 %v520, %v516
    %v621 = vpack.c.b16 %v521, %v517
    %v622 = vpack.c.b16 %v526, %v522
    %v623 = vpack.c.b16 %v527, %v523
    %v624 = vpack.c.b16 %v528, %v524
    %v625 = vpack.c.b16 %v529, %v525
    %v626 = vpack.c.b16 %v534, %v530
    %v627 = vpack.c.b16 %v535, %v531
    %v628 = vpack.c.b16 %v536, %v532
    %v629 = vpack.c.b16 %v537, %v533
    %v630 = vpack.c.b16 %v542, %v538
    %v631 = vpack.c.b16 %v543, %v539
    %v632 = vpack.c.b16 %v544, %v540
    %v633 = vpack.c.b16 %v545, %v541
    %v634 = vpack.c.b16 %v550, %v546
    %v635 = vpack.c.b16 %v551, %v547
    %v636 = vpack.c.b16 %v552, %v548
    %v637 = vpack.c.b16 %v553, %v549
    %v638 = vpack.c.b16 %v558, %v554
    %v639 = vpack.c.b16 %v559, %v555
    %v640 = vpack.c.b16 %v560, %v556
    %v641 = vpack.c.b16 %v561, %v557
    %v642 = vpack.c.b16 %v566, %v562
    %v643 = vpack.c.b16 %v567, %v563
    %v644 = vpack.c.b16 %v568, %v564
    %v645 = vpack.c.b16 %v569, %v565
    %v646 = vpack.c.b16 %v574, %v570
    %v647 = vpack.c.b16 %v575, %v571
    %v648 = vpack.c.b16 %v576, %v572
    %v649 = vpack.c.b16 %v577, %v573
    %v650 = vpack.c.b16 %v582, %v578
    %v651 = vpack.c.b16 %v583, %v579
    %v652 = vpack.c.b16 %v584, %v580
    %v653 = vpack.c.b16 %v585, %v581
    %v654 = vpack.c.b16 %v590, %v586
    %v655 = vpack.c.b16 %v591, %v587
    %v656 = vpack.c.b16 %v592, %v588
    %v657 = vpack.c.b16 %v593, %v589
    %722 = vmatprep.subr.bf16.mxu0 %v623
    %723 = vmatpush1.bf16.msra.mxu0 %v622
    %724 = vmatprep.subr.bf16.mxu0 %v619
    %725 = vmatpush1.bf16.msra.mxu0 %v618
    %726 = vmatprep.subr.bf16.mxu0 %v615
    %727 = vmatpush1.bf16.msra.mxu0 %v614
    %728 = vmatprep.subr.bf16.mxu0 %v611
    %729 = vmatpush1.bf16.msra.mxu0 %v610
    %730 = vmatprep.subr.bf16.mxu0 %v607
    %731 = vmatpush1.bf16.msra.mxu0 %v606
    %732 = vmatprep.subr.bf16.mxu0 %v603
    %733 = vmatpush1.bf16.msra.mxu0 %v602
    %734 = vmatprep.subr.bf16.mxu0 %v599
    %735 = vmatpush1.bf16.msra.mxu0 %v598
    %736 = vmatprep.subr.bf16.mxu0 %v595
    %737 = vmatpush1.bf16.msra.mxu0 %v594
    %738 = vmatprep.subr.bf16.mxu0 %v655
    %739 = vmatpush2.bf16.msra.mxu0 %v654
    %740 = vmatprep.subr.bf16.mxu0 %v651
    %741 = vmatpush2.bf16.msra.mxu0 %v650
    %742 = vmatprep.subr.bf16.mxu0 %v647
    %743 = vmatpush2.bf16.msra.mxu0 %v646
    %744 = vmatprep.subr.bf16.mxu0 %v643
    %745 = vmatpush2.bf16.msra.mxu0 %v642
    %746 = vmatprep.subr.bf16.mxu0 %v639
    %747 = vmatpush2.bf16.msra.mxu0 %v638
    %748 = vmatprep.subr.bf16.mxu0 %v635
    %749 = vmatpush2.bf16.msra.mxu0 %v634
    %750 = vmatprep.subr.bf16.mxu0 %v631
    %751 = vmatpush2.bf16.msra.mxu0 %v630
    %752 = vmatprep.subr.bf16.mxu0 %v627
    %753 = vmatpush2.bf16.msra.mxu0 %v626
    %754 = vmatprep.mubr.bf16.mxu0 %v315
    %755 = vmatmul.mubr.bf16.gmra.mxu0 %v314
    %v756 = vpop.f32.mrf.mxu0
    %v757 = vadd.f32 %v385, %v756
    %v758 = vpop.f32.mrf.mxu0
    %v759 = vadd.f32 %v389, %v758
    %v760 = vpop.f32.mrf.mxu0
    %v761 = vpop.f32.mrf.mxu0
    %762 = vdwg.mxu0
    %763 = vmatprep.subr.bf16.mxu0 %v625
    %764 = vmatpush1.bf16.msra.mxu0 %v624
    %765 = vmatprep.subr.bf16.mxu0 %v621
    %766 = vmatpush1.bf16.msra.mxu0 %v620
    %767 = vmatprep.subr.bf16.mxu0 %v617
    %768 = vmatpush1.bf16.msra.mxu0 %v616
    %769 = vmatprep.subr.bf16.mxu0 %v613
    %770 = vmatpush1.bf16.msra.mxu0 %v612
    %771 = vmatprep.subr.bf16.mxu0 %v609
    %772 = vmatpush1.bf16.msra.mxu0 %v608
    %773 = vmatprep.subr.bf16.mxu0 %v605
    %774 = vmatpush1.bf16.msra.mxu0 %v604
    %775 = vmatprep.subr.bf16.mxu0 %v601
    %776 = vmatpush1.bf16.msra.mxu0 %v600
    %777 = vmatprep.subr.bf16.mxu0 %v597
    %778 = vmatpush1.bf16.msra.mxu0 %v596
    %779 = vmatprep.subr.bf16.mxu0 %v657
    %780 = vmatpush2.bf16.msra.mxu0 %v656
    %781 = vmatprep.subr.bf16.mxu0 %v653
    %782 = vmatpush2.bf16.msra.mxu0 %v652
    %783 = vmatprep.subr.bf16.mxu0 %v649
    %784 = vmatpush2.bf16.msra.mxu0 %v648
    %785 = vmatprep.subr.bf16.mxu0 %v645
    %786 = vmatpush2.bf16.msra.mxu0 %v644
    %787 = vmatprep.subr.bf16.mxu0 %v641
    %788 = vmatpush2.bf16.msra.mxu0 %v640
    %789 = vmatprep.subr.bf16.mxu0 %v637
    %790 = vmatpush2.bf16.msra.mxu0 %v636
    %791 = vmatprep.subr.bf16.mxu0 %v633
    %792 = vmatpush2.bf16.msra.mxu0 %v632
    %793 = vmatprep.subr.bf16.mxu0 %v629
    %794 = vmatpush2.bf16.msra.mxu0 %v628
    %795 = vmatprep.mubr.bf16.mxu0 %v315
    %796 = vmatmul.mubr.bf16.gmra.mxu0 %v314
    %v797 = vpop.f32.mrf.mxu0
    %v798 = vadd.f32 %v393, %v797
    %v799 = vpop.f32.mrf.mxu0
    %v800 = vadd.f32 %v397, %v799
    %v801 = vpop.f32.mrf.mxu0
    %v802 = vpop.f32.mrf.mxu0
    %803 = vdwg.mxu0
    %vm804 = vcmp.gt.f32.partialorder %v757, 0.0
    %vm805 = vcmp.gt.f32.partialorder %v759, 0.0
    %vm806 = vcmp.gt.f32.partialorder %v798, 0.0
    %vm807 = vcmp.gt.f32.partialorder %v800, 0.0
    %v808 = vmul.f32 %v757, 0.2
    %v809 = vmul.f32 %v759, 0.2
    %v810 = vmul.f32 %v798, 0.2
    %v811 = vmul.f32 %v800, 0.2
    %v812 = vsel %vm804, %v757, %v808
    %v813 = vsel %vm805, %v759, %v809
    %v814 = vsel %vm806, %v798, %v810
    %v815 = vsel %vm807, %v800, %v811
    %v816 = vpack.c.bf16 %v812, %v812
    %v817 = vpack.c.bf16 %v813, %v813
    %v818 = vpack.c.bf16 %v814, %v814
    %v819 = vpack.c.bf16 %v815, %v815
    %v820 = vld [vmem:[#allocation7] sm:$0xff]
    %v821 = vld [vmem:[#allocation7 + $0x8] sm:$0xff]
    %v822 = vld [vmem:[#allocation7 + $0x10] sm:$0xff]
    %v823 = vld [vmem:[#allocation7 + $0x18] sm:$0xff]
    %v824 = vld [vmem:[#allocation7 + $0x20] sm:$0xff]
    %v825 = vld [vmem:[#allocation7 + $0x28] sm:$0xff]
    %v826 = vld [vmem:[#allocation7 + $0x30] sm:$0xff]
    %v827 = vld [vmem:[#allocation7 + $0x38] sm:$0xff]
    %v828 = vld [vmem:[#allocation7 + $0x40] sm:$0xff]
    %v829 = vld [vmem:[#allocation7 + $0x48] sm:$0xff]
    %v830 = vld [vmem:[#allocation7 + $0x50] sm:$0xff]
    %v831 = vld [vmem:[#allocation7 + $0x58] sm:$0xff]
    %v832 = vld [vmem:[#allocation7 + $0x60] sm:$0xff]
    %v833 = vld [vmem:[#allocation7 + $0x68] sm:$0xff]
    %v834 = vld [vmem:[#allocation7 + $0x70] sm:$0xff]
    %v835 = vld [vmem:[#allocation7 + $0x78] sm:$0xff]
    %v836 = vld [vmem:[#allocation7 + $0x80] sm:$0xff]
    %v837 = vld [vmem:[#allocation7 + $0x88] sm:$0xff]
    %v838 = vld [vmem:[#allocation7 + $0x90] sm:$0xff]
    %v839 = vld [vmem:[#allocation7 + $0x98] sm:$0xff]
    %v840 = vld [vmem:[#allocation7 + $0xa0] sm:$0xff]
    %v841 = vld [vmem:[#allocation7 + $0xa8] sm:$0xff]
    %v842 = vld [vmem:[#allocation7 + $0xb0] sm:$0xff]
    %v843 = vld [vmem:[#allocation7 + $0xb8] sm:$0xff]
    %v844 = vld [vmem:[#allocation7 + $0xc0] sm:$0xff]
    %v845 = vld [vmem:[#allocation7 + $0xc8] sm:$0xff]
    %v846 = vld [vmem:[#allocation7 + $0xd0] sm:$0xff]
    %v847 = vld [vmem:[#allocation7 + $0xd8] sm:$0xff]
    %v848 = vld [vmem:[#allocation7 + $0xe0] sm:$0xff]
    %v849 = vld [vmem:[#allocation7 + $0xe8] sm:$0xff]
    %v850 = vld [vmem:[#allocation7 + $0xf0] sm:$0xff]
    %v851 = vld [vmem:[#allocation7 + $0xf8] sm:$0xff]
    %v852 = vld [vmem:[#allocation7 + $0x100] sm:$0xff]
    %v853 = vld [vmem:[#allocation7 + $0x108] sm:$0xff]
    %v854 = vld [vmem:[#allocation7 + $0x110] sm:$0xff]
    %v855 = vld [vmem:[#allocation7 + $0x118] sm:$0xff]
    %v856 = vld [vmem:[#allocation7 + $0x120] sm:$0xff]
    %v857 = vld [vmem:[#allocation7 + $0x128] sm:$0xff]
    %v858 = vld [vmem:[#allocation7 + $0x130] sm:$0xff]
    %v859 = vld [vmem:[#allocation7 + $0x138] sm:$0xff]
    %v860 = vld [vmem:[#allocation7 + $0x140] sm:$0xff]
    %v861 = vld [vmem:[#allocation7 + $0x148] sm:$0xff]
    %v862 = vld [vmem:[#allocation7 + $0x150] sm:$0xff]
    %v863 = vld [vmem:[#allocation7 + $0x158] sm:$0xff]
    %v864 = vld [vmem:[#allocation7 + $0x160] sm:$0xff]
    %v865 = vld [vmem:[#allocation7 + $0x168] sm:$0xff]
    %v866 = vld [vmem:[#allocation7 + $0x170] sm:$0xff]
    %v867 = vld [vmem:[#allocation7 + $0x178] sm:$0xff]
    %v868 = vld [vmem:[#allocation7 + $0x180] sm:$0xff]
    %v869 = vld [vmem:[#allocation7 + $0x188] sm:$0xff]
    %v870 = vld [vmem:[#allocation7 + $0x190] sm:$0xff]
    %v871 = vld [vmem:[#allocation7 + $0x198] sm:$0xff]
    %v872 = vld [vmem:[#allocation7 + $0x1a0] sm:$0xff]
    %v873 = vld [vmem:[#allocation7 + $0x1a8] sm:$0xff]
    %v874 = vld [vmem:[#allocation7 + $0x1b0] sm:$0xff]
    %v875 = vld [vmem:[#allocation7 + $0x1b8] sm:$0xff]
    %v876 = vld [vmem:[#allocation7 + $0x1c0] sm:$0xff]
    %v877 = vld [vmem:[#allocation7 + $0x1c8] sm:$0xff]
    %v878 = vld [vmem:[#allocation7 + $0x1d0] sm:$0xff]
    %v879 = vld [vmem:[#allocation7 + $0x1d8] sm:$0xff]
    %v880 = vld [vmem:[#allocation7 + $0x1e0] sm:$0xff]
    %v881 = vld [vmem:[#allocation7 + $0x1e8] sm:$0xff]
    %v882 = vld [vmem:[#allocation7 + $0x1f0] sm:$0xff]
    %v883 = vld [vmem:[#allocation7 + $0x1f8] sm:$0xff]
    %v884 = vld [vmem:[#allocation8] sm:$0x3]
    %v886 = vlaneseq
    %v887 = vshrl.u32 %v886, 7
    %v888 = vsub.s32 0, %v887
    %v889 = vrot.slane %v884, %v888
    %v890 = vlaneseq
    %v891 = vshrl.u32 %v890, 7
    %v892 = vsub.s32 1, %v891
    %v893 = vrot.slane %v884, %v892
    %v960 = vunpack.c.l.b16 %v820
    %v961 = vunpack.c.h.b16 %v820
    %v962 = vunpack.c.l.b16 %v821
    %v963 = vunpack.c.h.b16 %v821
    %v964 = vunpack.c.l.b16 %v822
    %v965 = vunpack.c.h.b16 %v822
    %v966 = vunpack.c.l.b16 %v823
    %v967 = vunpack.c.h.b16 %v823
    %v968 = vunpack.c.l.b16 %v824
    %v969 = vunpack.c.h.b16 %v824
    %v970 = vunpack.c.l.b16 %v825
    %v971 = vunpack.c.h.b16 %v825
    %v972 = vunpack.c.l.b16 %v826
    %v973 = vunpack.c.h.b16 %v826
    %v974 = vunpack.c.l.b16 %v827
    %v975 = vunpack.c.h.b16 %v827
    %v976 = vunpack.c.l.b16 %v828
    %v977 = vunpack.c.h.b16 %v828
    %v978 = vunpack.c.l.b16 %v829
    %v979 = vunpack.c.h.b16 %v829
    %v980 = vunpack.c.l.b16 %v830
    %v981 = vunpack.c.h.b16 %v830
    %v982 = vunpack.c.l.b16 %v831
    %v983 = vunpack.c.h.b16 %v831
    %v984 = vunpack.c.l.b16 %v832
    %v985 = vunpack.c.h.b16 %v832
    %v986 = vunpack.c.l.b16 %v833
    %v987 = vunpack.c.h.b16 %v833
    %v988 = vunpack.c.l.b16 %v834
    %v989 = vunpack.c.h.b16 %v834
    %v990 = vunpack.c.l.b16 %v835
    %v991 = vunpack.c.h.b16 %v835
    %v992 = vunpack.c.l.b16 %v836
    %v993 = vunpack.c.h.b16 %v836
    %v994 = vunpack.c.l.b16 %v837
    %v995 = vunpack.c.h.b16 %v837
    %v996 = vunpack.c.l.b16 %v838
    %v997 = vunpack.c.h.b16 %v838
    %v998 = vunpack.c.l.b16 %v839
    %v999 = vunpack.c.h.b16 %v839
    %v1000 = vunpack.c.l.b16 %v840
    %v1001 = vunpack.c.h.b16 %v840
    %v1002 = vunpack.c.l.b16 %v841
    %v1003 = vunpack.c.h.b16 %v841
    %v1004 = vunpack.c.l.b16 %v842
    %v1005 = vunpack.c.h.b16 %v842
    %v1006 = vunpack.c.l.b16 %v843
    %v1007 = vunpack.c.h.b16 %v843
    %v1008 = vunpack.c.l.b16 %v844
    %v1009 = vunpack.c.h.b16 %v844
    %v1010 = vunpack.c.l.b16 %v845
    %v1011 = vunpack.c.h.b16 %v845
    %v1012 = vunpack.c.l.b16 %v846
    %v1013 = vunpack.c.h.b16 %v846
    %v1014 = vunpack.c.l.b16 %v847
    %v1015 = vunpack.c.h.b16 %v847
    %v1016 = vunpack.c.l.b16 %v848
    %v1017 = vunpack.c.h.b16 %v848
    %v1018 = vunpack.c.l.b16 %v849
    %v1019 = vunpack.c.h.b16 %v849
    %v1020 = vunpack.c.l.b16 %v850
    %v1021 = vunpack.c.h.b16 %v850
    %v1022 = vunpack.c.l.b16 %v851
    %v1023 = vunpack.c.h.b16 %v851
    %v1024 = vunpack.c.l.b16 %v852
    %v1025 = vunpack.c.h.b16 %v852
    %v1026 = vunpack.c.l.b16 %v853
    %v1027 = vunpack.c.h.b16 %v853
    %v1028 = vunpack.c.l.b16 %v854
    %v1029 = vunpack.c.h.b16 %v854
    %v1030 = vunpack.c.l.b16 %v855
    %v1031 = vunpack.c.h.b16 %v855
    %v1032 = vunpack.c.l.b16 %v856
    %v1033 = vunpack.c.h.b16 %v856
    %v1034 = vunpack.c.l.b16 %v857
    %v1035 = vunpack.c.h.b16 %v857
    %v1036 = vunpack.c.l.b16 %v858
    %v1037 = vunpack.c.h.b16 %v858
    %v1038 = vunpack.c.l.b16 %v859
    %v1039 = vunpack.c.h.b16 %v859
    %v1040 = vunpack.c.l.b16 %v860
    %v1041 = vunpack.c.h.b16 %v860
    %v1042 = vunpack.c.l.b16 %v861
    %v1043 = vunpack.c.h.b16 %v861
    %v1044 = vunpack.c.l.b16 %v862
    %v1045 = vunpack.c.h.b16 %v862
    %v1046 = vunpack.c.l.b16 %v863
    %v1047 = vunpack.c.h.b16 %v863
    %v1048 = vunpack.c.l.b16 %v864
    %v1049 = vunpack.c.h.b16 %v864
    %v1050 = vunpack.c.l.b16 %v865
    %v1051 = vunpack.c.h.b16 %v865
    %v1052 = vunpack.c.l.b16 %v866
    %v1053 = vunpack.c.h.b16 %v866
    %v1054 = vunpack.c.l.b16 %v867
    %v1055 = vunpack.c.h.b16 %v867
    %v1056 = vunpack.c.l.b16 %v868
    %v1057 = vunpack.c.h.b16 %v868
    %v1058 = vunpack.c.l.b16 %v869
    %v1059 = vunpack.c.h.b16 %v869
    %v1060 = vunpack.c.l.b16 %v870
    %v1061 = vunpack.c.h.b16 %v870
    %v1062 = vunpack.c.l.b16 %v871
    %v1063 = vunpack.c.h.b16 %v871
    %v1064 = vunpack.c.l.b16 %v872
    %v1065 = vunpack.c.h.b16 %v872
    %v1066 = vunpack.c.l.b16 %v873
    %v1067 = vunpack.c.h.b16 %v873
    %v1068 = vunpack.c.l.b16 %v874
    %v1069 = vunpack.c.h.b16 %v874
    %v1070 = vunpack.c.l.b16 %v875
    %v1071 = vunpack.c.h.b16 %v875
    %v1072 = vunpack.c.l.b16 %v876
    %v1073 = vunpack.c.h.b16 %v876
    %v1074 = vunpack.c.l.b16 %v877
    %v1075 = vunpack.c.h.b16 %v877
    %v1076 = vunpack.c.l.b16 %v878
    %v1077 = vunpack.c.h.b16 %v878
    %v1078 = vunpack.c.l.b16 %v879
    %v1079 = vunpack.c.h.b16 %v879
    %v1080 = vunpack.c.l.b16 %v880
    %v1081 = vunpack.c.h.b16 %v880
    %v1082 = vunpack.c.l.b16 %v881
    %v1083 = vunpack.c.h.b16 %v881
    %v1084 = vunpack.c.l.b16 %v882
    %v1085 = vunpack.c.h.b16 %v882
    %v1086 = vunpack.c.l.b16 %v883
    %v1087 = vunpack.c.h.b16 %v883
    %v1088 = vpack.c.b16 %v962, %v960
    %v1089 = vpack.c.b16 %v963, %v961
    %v1090 = vpack.c.b16 %v966, %v964
    %v1091 = vpack.c.b16 %v967, %v965
    %v1092 = vpack.c.b16 %v970, %v968
    %v1093 = vpack.c.b16 %v971, %v969
    %v1094 = vpack.c.b16 %v974, %v972
    %v1095 = vpack.c.b16 %v975, %v973
    %v1096 = vpack.c.b16 %v978, %v976
    %v1097 = vpack.c.b16 %v979, %v977
    %v1098 = vpack.c.b16 %v982, %v980
    %v1099 = vpack.c.b16 %v983, %v981
    %v1100 = vpack.c.b16 %v986, %v984
    %v1101 = vpack.c.b16 %v987, %v985
    %v1102 = vpack.c.b16 %v990, %v988
    %v1103 = vpack.c.b16 %v991, %v989
    %v1104 = vpack.c.b16 %v994, %v992
    %v1105 = vpack.c.b16 %v995, %v993
    %v1106 = vpack.c.b16 %v998, %v996
    %v1107 = vpack.c.b16 %v999, %v997
    %v1108 = vpack.c.b16 %v1002, %v1000
    %v1109 = vpack.c.b16 %v1003, %v1001
    %v1110 = vpack.c.b16 %v1006, %v1004
    %v1111 = vpack.c.b16 %v1007, %v1005
    %v1112 = vpack.c.b16 %v1010, %v1008
    %v1113 = vpack.c.b16 %v1011, %v1009
    %v1114 = vpack.c.b16 %v1014, %v1012
    %v1115 = vpack.c.b16 %v1015, %v1013
    %v1116 = vpack.c.b16 %v1018, %v1016
    %v1117 = vpack.c.b16 %v1019, %v1017
    %v1118 = vpack.c.b16 %v1022, %v1020
    %v1119 = vpack.c.b16 %v1023, %v1021
    %v1120 = vpack.c.b16 %v1026, %v1024
    %v1121 = vpack.c.b16 %v1027, %v1025
    %v1122 = vpack.c.b16 %v1030, %v1028
    %v1123 = vpack.c.b16 %v1031, %v1029
    %v1124 = vpack.c.b16 %v1034, %v1032
    %v1125 = vpack.c.b16 %v1035, %v1033
    %v1126 = vpack.c.b16 %v1038, %v1036
    %v1127 = vpack.c.b16 %v1039, %v1037
    %v1128 = vpack.c.b16 %v1042, %v1040
    %v1129 = vpack.c.b16 %v1043, %v1041
    %v1130 = vpack.c.b16 %v1046, %v1044
    %v1131 = vpack.c.b16 %v1047, %v1045
    %v1132 = vpack.c.b16 %v1050, %v1048
    %v1133 = vpack.c.b16 %v1051, %v1049
    %v1134 = vpack.c.b16 %v1054, %v1052
    %v1135 = vpack.c.b16 %v1055, %v1053
    %v1136 = vpack.c.b16 %v1058, %v1056
    %v1137 = vpack.c.b16 %v1059, %v1057
    %v1138 = vpack.c.b16 %v1062, %v1060
    %v1139 = vpack.c.b16 %v1063, %v1061
    %v1140 = vpack.c.b16 %v1066, %v1064
    %v1141 = vpack.c.b16 %v1067, %v1065
    %v1142 = vpack.c.b16 %v1070, %v1068
    %v1143 = vpack.c.b16 %v1071, %v1069
    %v1144 = vpack.c.b16 %v1074, %v1072
    %v1145 = vpack.c.b16 %v1075, %v1073
    %v1146 = vpack.c.b16 %v1078, %v1076
    %v1147 = vpack.c.b16 %v1079, %v1077
    %v1148 = vpack.c.b16 %v1082, %v1080
    %v1149 = vpack.c.b16 %v1083, %v1081
    %v1150 = vpack.c.b16 %v1086, %v1084
    %v1151 = vpack.c.b16 %v1087, %v1085
    %1216 = vmatprep.subr.bf16.mxu0 %v1103
    %1217 = vmatpush1.bf16.msra.mxu0 %v1102
    %1218 = vmatprep.subr.bf16.mxu0 %v1101
    %1219 = vmatpush1.bf16.msra.mxu0 %v1100
    %1220 = vmatprep.subr.bf16.mxu0 %v1099
    %1221 = vmatpush1.bf16.msra.mxu0 %v1098
    %1222 = vmatprep.subr.bf16.mxu0 %v1097
    %1223 = vmatpush1.bf16.msra.mxu0 %v1096
    %1224 = vmatprep.subr.bf16.mxu0 %v1095
    %1225 = vmatpush1.bf16.msra.mxu0 %v1094
    %1226 = vmatprep.subr.bf16.mxu0 %v1093
    %1227 = vmatpush1.bf16.msra.mxu0 %v1092
    %1228 = vmatprep.subr.bf16.mxu0 %v1091
    %1229 = vmatpush1.bf16.msra.mxu0 %v1090
    %1230 = vmatprep.subr.bf16.mxu0 %v1089
    %1231 = vmatpush1.bf16.msra.mxu0 %v1088
    %1232 = vmatprep.subr.bf16.mxu0 %v1119
    %1233 = vmatpush2.bf16.msra.mxu0 %v1118
    %1234 = vmatprep.subr.bf16.mxu0 %v1117
    %1235 = vmatpush2.bf16.msra.mxu0 %v1116
    %1236 = vmatprep.subr.bf16.mxu0 %v1115
    %1237 = vmatpush2.bf16.msra.mxu0 %v1114
    %1238 = vmatprep.subr.bf16.mxu0 %v1113
    %1239 = vmatpush2.bf16.msra.mxu0 %v1112
    %1240 = vmatprep.subr.bf16.mxu0 %v1111
    %1241 = vmatpush2.bf16.msra.mxu0 %v1110
    %1242 = vmatprep.subr.bf16.mxu0 %v1109
    %1243 = vmatpush2.bf16.msra.mxu0 %v1108
    %1244 = vmatprep.subr.bf16.mxu0 %v1107
    %1245 = vmatpush2.bf16.msra.mxu0 %v1106
    %1246 = vmatprep.subr.bf16.mxu0 %v1105
    %1247 = vmatpush2.bf16.msra.mxu0 %v1104
    %1248 = vmatprep.mubr.bf16.mxu0 %v817
    %1249 = vmatmul.mubr.bf16.gmra.mxu0 %v816
    %v1250 = vpop.f32.mrf.mxu0
    %v1251 = vadd.f32 %v889, %v1250
    %v1252 = vpop.f32.mrf.mxu0
    %v1253 = vadd.f32 %v893, %v1252
    %v1254 = vpop.f32.mrf.mxu0
    %v1255 = vpop.f32.mrf.mxu0
    %1256 = vdwg.mxu0
    %1257 = vmatprep.subr.bf16.mxu0 %v1135
    %1258 = vmatpush1.bf16.msra.mxu0 %v1134
    %1259 = vmatprep.subr.bf16.mxu0 %v1133
    %1260 = vmatpush1.bf16.msra.mxu0 %v1132
    %1261 = vmatprep.subr.bf16.mxu0 %v1131
    %1262 = vmatpush1.bf16.msra.mxu0 %v1130
    %1263 = vmatprep.subr.bf16.mxu0 %v1129
    %1264 = vmatpush1.bf16.msra.mxu0 %v1128
    %1265 = vmatprep.subr.bf16.mxu0 %v1127
    %1266 = vmatpush1.bf16.msra.mxu0 %v1126
    %1267 = vmatprep.subr.bf16.mxu0 %v1125
    %1268 = vmatpush1.bf16.msra.mxu0 %v1124
    %1269 = vmatprep.subr.bf16.mxu0 %v1123
    %1270 = vmatpush1.bf16.msra.mxu0 %v1122
    %1271 = vmatprep.subr.bf16.mxu0 %v1121
    %1272 = vmatpush1.bf16.msra.mxu0 %v1120
    %1273 = vmatprep.subr.bf16.mxu0 %v1151
    %1274 = vmatpush2.bf16.msra.mxu0 %v1150
    %1275 = vmatprep.subr.bf16.mxu0 %v1149
    %1276 = vmatpush2.bf16.msra.mxu0 %v1148
    %1277 = vmatprep.subr.bf16.mxu0 %v1147
    %1278 = vmatpush2.bf16.msra.mxu0 %v1146
    %1279 = vmatprep.subr.bf16.mxu0 %v1145
    %1280 = vmatpush2.bf16.msra.mxu0 %v1144
    %1281 = vmatprep.subr.bf16.mxu0 %v1143
    %1282 = vmatpush2.bf16.msra.mxu0 %v1142
    %1283 = vmatprep.subr.bf16.mxu0 %v1141
    %1284 = vmatpush2.bf16.msra.mxu0 %v1140
    %1285 = vmatprep.subr.bf16.mxu0 %v1139
    %1286 = vmatpush2.bf16.msra.mxu0 %v1138
    %1287 = vmatprep.subr.bf16.mxu0 %v1137
    %1288 = vmatpush2.bf16.msra.mxu0 %v1136
    %1289 = vmatprep.mubr.bf16.mxu0 %v819
    %1290 = vmatmul.mubr.bf16.gmra.mxu0 %v818
    %v1291 = vpop.f32.mrf.mxu0
    %v1292 = vadd.f32 %v1251, %v1291
    %v1293 = vpop.f32.mrf.mxu0
    %v1294 = vadd.f32 %v1253, %v1293
    %v1295 = vpop.f32.mrf.mxu0
    %v1296 = vpop.f32.mrf.mxu0
    %1297 = vdwg.mxu0
    %vm1298 = vcmp.gt.f32.partialorder %v1292, 0.0
    %vm1299 = vcmp.gt.f32.partialorder %v1294, 0.0
    %v1300 = vmul.f32 %v1292, 0.2
    %v1301 = vmul.f32 %v1294, 0.2
    %v1302 = vsel %vm1298, %v1292, %v1300
    %v1303 = vsel %vm1299, %v1294, %v1301
    %v1304 = vpack.c.bf16 %v1302, %v1302
    %v1305 = vpack.c.bf16 %v1303, %v1303
    %v1306 = vld [vmem:[#allocation10] sm:$0xf]
    %v1307 = vld [vmem:[#allocation10 + $0x4] sm:$0xf]
    %v1308 = vld [vmem:[#allocation10 + $0x8] sm:$0xf]
    %v1309 = vld [vmem:[#allocation10 + $0xc] sm:$0xf]
    %v1310 = vld [vmem:[#allocation10 + $0x10] sm:$0xf]
    %v1311 = vld [vmem:[#allocation10 + $0x14] sm:$0xf]
    %v1312 = vld [vmem:[#allocation10 + $0x18] sm:$0xf]
    %v1313 = vld [vmem:[#allocation10 + $0x1c] sm:$0xf]
    %v1314 = vld [vmem:[#allocation10 + $0x20] sm:$0xf]
    %v1315 = vld [vmem:[#allocation10 + $0x24] sm:$0xf]
    %v1316 = vld [vmem:[#allocation10 + $0x28] sm:$0xf]
    %v1317 = vld [vmem:[#allocation10 + $0x2c] sm:$0xf]
    %v1318 = vld [vmem:[#allocation10 + $0x30] sm:$0xf]
    %v1319 = vld [vmem:[#allocation10 + $0x34] sm:$0xf]
    %v1320 = vld [vmem:[#allocation10 + $0x38] sm:$0xf]
    %v1321 = vld [vmem:[#allocation10 + $0x3c] sm:$0xf]
    %v1322 = vld [vmem:[#allocation10 + $0x40] sm:$0xf]
    %v1323 = vld [vmem:[#allocation10 + $0x44] sm:$0xf]
    %v1324 = vld [vmem:[#allocation10 + $0x48] sm:$0xf]
    %v1325 = vld [vmem:[#allocation10 + $0x4c] sm:$0xf]
    %v1326 = vld [vmem:[#allocation10 + $0x50] sm:$0xf]
    %v1327 = vld [vmem:[#allocation10 + $0x54] sm:$0xf]
    %v1328 = vld [vmem:[#allocation10 + $0x58] sm:$0xf]
    %v1329 = vld [vmem:[#allocation10 + $0x5c] sm:$0xf]
    %v1330 = vld [vmem:[#allocation10 + $0x60] sm:$0xf]
    %v1331 = vld [vmem:[#allocation10 + $0x64] sm:$0xf]
    %v1332 = vld [vmem:[#allocation10 + $0x68] sm:$0xf]
    %v1333 = vld [vmem:[#allocation10 + $0x6c] sm:$0xf]
    %v1334 = vld [vmem:[#allocation10 + $0x70] sm:$0xf]
    %v1335 = vld [vmem:[#allocation10 + $0x74] sm:$0xf]
    %v1336 = vld [vmem:[#allocation10 + $0x78] sm:$0xf]
    %v1337 = vld [vmem:[#allocation10 + $0x7c] sm:$0xf]
    %v1338 = vld [vmem:[#allocation11] sm:$0x1]
    %v1340 = vlaneseq
    %v1341 = vshrl.u32 %v1340, 7
    %v1342 = vsub.s32 0, %v1341
    %v1343 = vrot.slane %v1338, %v1342
    %v1377 = vunpack.c.l.b16 %v1306
    %v1378 = vunpack.c.l.b16 %v1307
    %v1379 = vunpack.c.l.b16 %v1308
    %v1380 = vunpack.c.l.b16 %v1309
    %v1381 = vunpack.c.l.b16 %v1310
    %v1382 = vunpack.c.l.b16 %v1311
    %v1383 = vunpack.c.l.b16 %v1312
    %v1384 = vunpack.c.l.b16 %v1313
    %v1385 = vunpack.c.l.b16 %v1314
    %v1386 = vunpack.c.l.b16 %v1315
    %v1387 = vunpack.c.l.b16 %v1316
    %v1388 = vunpack.c.l.b16 %v1317
    %v1389 = vunpack.c.l.b16 %v1318
    %v1390 = vunpack.c.l.b16 %v1319
    %v1391 = vunpack.c.l.b16 %v1320
    %v1392 = vunpack.c.l.b16 %v1321
    %v1393 = vunpack.c.l.b16 %v1322
    %v1394 = vunpack.c.l.b16 %v1323
    %v1395 = vunpack.c.l.b16 %v1324
    %v1396 = vunpack.c.l.b16 %v1325
    %v1397 = vunpack.c.l.b16 %v1326
    %v1398 = vunpack.c.l.b16 %v1327
    %v1399 = vunpack.c.l.b16 %v1328
    %v1400 = vunpack.c.l.b16 %v1329
    %v1401 = vunpack.c.l.b16 %v1330
    %v1402 = vunpack.c.l.b16 %v1331
    %v1403 = vunpack.c.l.b16 %v1332
    %v1404 = vunpack.c.l.b16 %v1333
    %v1405 = vunpack.c.l.b16 %v1334
    %v1406 = vunpack.c.l.b16 %v1335
    %v1407 = vunpack.c.l.b16 %v1336
    %v1408 = vunpack.c.l.b16 %v1337
    %v1409 = vpack.c.b16 %v1378, %v1377
    %v1410 = vpack.c.b16 %v1380, %v1379
    %v1411 = vpack.c.b16 %v1382, %v1381
    %v1412 = vpack.c.b16 %v1384, %v1383
    %v1413 = vpack.c.b16 %v1386, %v1385
    %v1414 = vpack.c.b16 %v1388, %v1387
    %v1415 = vpack.c.b16 %v1390, %v1389
    %v1416 = vpack.c.b16 %v1392, %v1391
    %v1417 = vpack.c.b16 %v1394, %v1393
    %v1418 = vpack.c.b16 %v1396, %v1395
    %v1419 = vpack.c.b16 %v1398, %v1397
    %v1420 = vpack.c.b16 %v1400, %v1399
    %v1421 = vpack.c.b16 %v1402, %v1401
    %v1422 = vpack.c.b16 %v1404, %v1403
    %v1423 = vpack.c.b16 %v1406, %v1405
    %v1424 = vpack.c.b16 %v1408, %v1407
    %1441 = vmatprep.subr.bf16.mxu0 0
    %1442 = vmatpush1.bf16.msra.mxu0 %v1416
    %1443 = vmatprep.subr.bf16.mxu0 0
    %1444 = vmatpush1.bf16.msra.mxu0 %v1415
    %1445 = vmatprep.subr.bf16.mxu0 0
    %1446 = vmatpush1.bf16.msra.mxu0 %v1414
    %1447 = vmatprep.subr.bf16.mxu0 0
    %1448 = vmatpush1.bf16.msra.mxu0 %v1413
    %1449 = vmatprep.subr.bf16.mxu0 0
    %1450 = vmatpush1.bf16.msra.mxu0 %v1412
    %1451 = vmatprep.subr.bf16.mxu0 0
    %1452 = vmatpush1.bf16.msra.mxu0 %v1411
    %1453 = vmatprep.subr.bf16.mxu0 0
    %1454 = vmatpush1.bf16.msra.mxu0 %v1410
    %1455 = vmatprep.subr.bf16.mxu0 0
    %1456 = vmatpush1.bf16.msra.mxu0 %v1409
    %1457 = vmatprep.subr.bf16.mxu0 0
    %1458 = vmatpush2.bf16.msra.mxu0 %v1424
    %1459 = vmatprep.subr.bf16.mxu0 0
    %1460 = vmatpush2.bf16.msra.mxu0 %v1423
    %1461 = vmatprep.subr.bf16.mxu0 0
    %1462 = vmatpush2.bf16.msra.mxu0 %v1422
    %1463 = vmatprep.subr.bf16.mxu0 0
    %1464 = vmatpush2.bf16.msra.mxu0 %v1421
    %1465 = vmatprep.subr.bf16.mxu0 0
    %1466 = vmatpush2.bf16.msra.mxu0 %v1420
    %1467 = vmatprep.subr.bf16.mxu0 0
    %1468 = vmatpush2.bf16.msra.mxu0 %v1419
    %1469 = vmatprep.subr.bf16.mxu0 0
    %1470 = vmatpush2.bf16.msra.mxu0 %v1418
    %1471 = vmatprep.subr.bf16.mxu0 0
    %1472 = vmatpush2.bf16.msra.mxu0 %v1417
    %1473 = vmatprep.mubr.bf16.mxu0 %v1305
    %1474 = vmatmul.mubr.bf16.gmra.mxu0 %v1304
    %v1475 = vpop.f32.mrf.mxu0
    %v1476 = vadd.f32 %v1343, %v1475
    %v1477 = vpop.f32.mrf.mxu0
    %v1478 = vpop.f32.mrf.mxu0
    %v1479 = vpop.f32.mrf.mxu0
    %1480 = vdwg.mxu0
    %vm1481 = vcmp.gt.f32.partialorder %v1476, 0.0
    %v1482 = vmul.f32 %v1476, 0.2
    %v1483 = vsel %vm1481, %v1476, %v1482
    %v1484 = vpack.c.bf16 %v1483, %v1483
    %v1485 = vld [vmem:[#allocation13] sm:$0xf]
    %v1486 = vld [vmem:[#allocation13 + $0x4] sm:$0xf]
    %v1487 = vld [vmem:[#allocation13 + $0x8] sm:$0xf]
    %v1488 = vld [vmem:[#allocation13 + $0xc] sm:$0xf]
    %v1489 = vld [vmem:[#allocation13 + $0x10] sm:$0xf]
    %v1490 = vld [vmem:[#allocation13 + $0x14] sm:$0xf]
    %v1491 = vld [vmem:[#allocation13 + $0x18] sm:$0xf]
    %v1492 = vld [vmem:[#allocation13 + $0x1c] sm:$0xf]
    %v1493 = vld [vmem:[#allocation13 + $0x20] sm:$0xf]
    %v1494 = vld [vmem:[#allocation13 + $0x24] sm:$0xf]
    %v1495 = vld [vmem:[#allocation13 + $0x28] sm:$0xf]
    %v1496 = vld [vmem:[#allocation13 + $0x2c] sm:$0xf]
    %v1497 = vld [vmem:[#allocation13 + $0x30] sm:$0xf]
    %v1498 = vld [vmem:[#allocation13 + $0x34] sm:$0xf]
    %v1499 = vld [vmem:[#allocation13 + $0x38] sm:$0xf]
    %v1500 = vld [vmem:[#allocation13 + $0x3c] sm:$0xf]
    %v1501 = vld [vmem:[#allocation14] sm:$0x1]
    %v1503 = vlaneseq
    %v1504 = vshrl.u32 %v1503, 7
    %v1505 = vsub.s32 0, %v1504
    %v1506 = vrot.slane %v1501, %v1505
    %v1524 = vunpack.c.l.b16 %v1485
    %v1525 = vunpack.c.l.b16 %v1486
    %v1526 = vunpack.c.l.b16 %v1487
    %v1527 = vunpack.c.l.b16 %v1488
    %v1528 = vunpack.c.l.b16 %v1489
    %v1529 = vunpack.c.l.b16 %v1490
    %v1530 = vunpack.c.l.b16 %v1491
    %v1531 = vunpack.c.l.b16 %v1492
    %v1532 = vunpack.c.l.b16 %v1493
    %v1533 = vunpack.c.l.b16 %v1494
    %v1534 = vunpack.c.l.b16 %v1495
    %v1535 = vunpack.c.l.b16 %v1496
    %v1536 = vunpack.c.l.b16 %v1497
    %v1537 = vunpack.c.l.b16 %v1498
    %v1538 = vunpack.c.l.b16 %v1499
    %v1539 = vunpack.c.l.b16 %v1500
    %v1540 = vpack.c.b16 %v1525, %v1524
    %v1541 = vpack.c.b16 %v1527, %v1526
    %v1542 = vpack.c.b16 %v1529, %v1528
    %v1543 = vpack.c.b16 %v1531, %v1530
    %v1544 = vpack.c.b16 %v1533, %v1532
    %v1545 = vpack.c.b16 %v1535, %v1534
    %v1546 = vpack.c.b16 %v1537, %v1536
    %v1547 = vpack.c.b16 %v1539, %v1538
    %1556 = vmatprep.subr.bf16.mxu0 0
    %1557 = vmatpush1.bf16.msra.mxu0 %v1547
    %1558 = vmatprep.subr.bf16.mxu0 0
    %1559 = vmatpush1.bf16.msra.mxu0 %v1546
    %1560 = vmatprep.subr.bf16.mxu0 0
    %1561 = vmatpush1.bf16.msra.mxu0 %v1545
    %1562 = vmatprep.subr.bf16.mxu0 0
    %1563 = vmatpush1.bf16.msra.mxu0 %v1544
    %1564 = vmatprep.subr.bf16.mxu0 0
    %1565 = vmatpush1.bf16.msra.mxu0 %v1543
    %1566 = vmatprep.subr.bf16.mxu0 0
    %1567 = vmatpush1.bf16.msra.mxu0 %v1542
    %1568 = vmatprep.subr.bf16.mxu0 0
    %1569 = vmatpush1.bf16.msra.mxu0 %v1541
    %1570 = vmatprep.subr.bf16.mxu0 0
    %1571 = vmatpush1.bf16.msra.mxu0 %v1540
    %1572 = vmatprep.subr.bf16.mxu0 0
    %1573 = vmatpush2.bf16.msra.mxu0 0
    %1574 = vmatprep.subr.bf16.mxu0 0
    %1575 = vmatpush2.bf16.msra.mxu0 0
    %1576 = vmatprep.subr.bf16.mxu0 0
    %1577 = vmatpush2.bf16.msra.mxu0 0
    %1578 = vmatprep.subr.bf16.mxu0 0
    %1579 = vmatpush2.bf16.msra.mxu0 0
    %1580 = vmatprep.subr.bf16.mxu0 0
    %1581 = vmatpush2.bf16.msra.mxu0 0
    %1582 = vmatprep.subr.bf16.mxu0 0
    %1583 = vmatpush2.bf16.msra.mxu0 0
    %1584 = vmatprep.subr.bf16.mxu0 0
    %1585 = vmatpush2.bf16.msra.mxu0 0
    %1586 = vmatprep.subr.bf16.mxu0 0
    %1587 = vmatpush2.bf16.msra.mxu0 0
    %1588 = vmatprep.mubr.bf16.mxu0 0
    %1589 = vmatmul.mubr.bf16.gmra.mxu0 %v1484
    %v1590 = vpop.f32.mrf.mxu0
    %v1591 = vadd.f32 %v1506, %v1590
    %v1592 = vpop.f32.mrf.mxu0
    %v1593 = vpop.f32.mrf.mxu0
    %v1594 = vpop.f32.mrf.mxu0
    %1595 = vdwg.mxu0
    %vm1596 = vcmp.gt.f32.partialorder %v1591, 0.0
    %v1597 = vmul.f32 %v1591, 0.2
    %v1598 = vsel %vm1596, %v1591, %v1597
    %v1599 = vpack.c.bf16 %v1598, %v1598
    %v1600 = vld [vmem:[#allocation16] sm:$0xff]
    %v1601 = vld [vmem:[#allocation16 + $0x8] sm:$0xff]
    %v1602 = vld [vmem:[#allocation16 + $0x10] sm:$0xff]
    %v1603 = vld [vmem:[#allocation16 + $0x18] sm:$0xff]
    %v1604 = vld [vmem:[#allocation16 + $0x20] sm:$0xff]
    %v1605 = vld [vmem:[#allocation16 + $0x28] sm:$0xff]
    %v1606 = vld [vmem:[#allocation16 + $0x30] sm:$0xff]
    %v1607 = vld [vmem:[#allocation16 + $0x38] sm:$0xff]
    %v1608 = vld [vmem:[#allocation16 + $0x40] sm:$0xff]
    %v1609 = vld [vmem:[#allocation16 + $0x48] sm:$0xff]
    %v1610 = vld [vmem:[#allocation16 + $0x50] sm:$0xff]
    %v1611 = vld [vmem:[#allocation16 + $0x58] sm:$0xff]
    %v1612 = vld [vmem:[#allocation16 + $0x60] sm:$0xff]
    %v1613 = vld [vmem:[#allocation16 + $0x68] sm:$0xff]
    %v1614 = vld [vmem:[#allocation16 + $0x70] sm:$0xff]
    %v1615 = vld [vmem:[#allocation16 + $0x78] sm:$0xff]
    %v1616 = vld [vmem:[#allocation17] sm:$0x3]
    %v1618 = vlaneseq
    %v1619 = vshrl.u32 %v1618, 7
    %v1620 = vsub.s32 0, %v1619
    %v1621 = vrot.slane %v1616, %v1620
    %v1622 = vlaneseq
    %v1623 = vshrl.u32 %v1622, 7
    %v1624 = vsub.s32 1, %v1623
    %v1625 = vrot.slane %v1616, %v1624
    %v1644 = vunpack.c.l.b16 %v1600
    %v1645 = vunpack.c.h.b16 %v1600
    %v1646 = vunpack.c.l.b16 %v1601
    %v1647 = vunpack.c.h.b16 %v1601
    %v1648 = vunpack.c.l.b16 %v1602
    %v1649 = vunpack.c.h.b16 %v1602
    %v1650 = vunpack.c.l.b16 %v1603
    %v1651 = vunpack.c.h.b16 %v1603
    %v1652 = vunpack.c.l.b16 %v1604
    %v1653 = vunpack.c.h.b16 %v1604
    %v1654 = vunpack.c.l.b16 %v1605
    %v1655 = vunpack.c.h.b16 %v1605
    %v1656 = vunpack.c.l.b16 %v1606
    %v1657 = vunpack.c.h.b16 %v1606
    %v1658 = vunpack.c.l.b16 %v1607
    %v1659 = vunpack.c.h.b16 %v1607
    %v1660 = vunpack.c.l.b16 %v1608
    %v1661 = vunpack.c.h.b16 %v1608
    %v1662 = vunpack.c.l.b16 %v1609
    %v1663 = vunpack.c.h.b16 %v1609
    %v1664 = vunpack.c.l.b16 %v1610
    %v1665 = vunpack.c.h.b16 %v1610
    %v1666 = vunpack.c.l.b16 %v1611
    %v1667 = vunpack.c.h.b16 %v1611
    %v1668 = vunpack.c.l.b16 %v1612
    %v1669 = vunpack.c.h.b16 %v1612
    %v1670 = vunpack.c.l.b16 %v1613
    %v1671 = vunpack.c.h.b16 %v1613
    %v1672 = vunpack.c.l.b16 %v1614
    %v1673 = vunpack.c.h.b16 %v1614
    %v1674 = vunpack.c.l.b16 %v1615
    %v1675 = vunpack.c.h.b16 %v1615
    %v1676 = vpack.c.b16 %v1646, %v1644
    %v1677 = vpack.c.b16 %v1647, %v1645
    %v1678 = vpack.c.b16 %v1650, %v1648
    %v1679 = vpack.c.b16 %v1651, %v1649
    %v1680 = vpack.c.b16 %v1654, %v1652
    %v1681 = vpack.c.b16 %v1655, %v1653
    %v1682 = vpack.c.b16 %v1658, %v1656
    %v1683 = vpack.c.b16 %v1659, %v1657
    %v1684 = vpack.c.b16 %v1662, %v1660
    %v1685 = vpack.c.b16 %v1663, %v1661
    %v1686 = vpack.c.b16 %v1666, %v1664
    %v1687 = vpack.c.b16 %v1667, %v1665
    %v1688 = vpack.c.b16 %v1670, %v1668
    %v1689 = vpack.c.b16 %v1671, %v1669
    %v1690 = vpack.c.b16 %v1674, %v1672
    %v1691 = vpack.c.b16 %v1675, %v1673
    %1708 = vmatprep.subr.bf16.mxu0 %v1691
    %1709 = vmatpush1.bf16.msra.mxu0 %v1690
    %1710 = vmatprep.subr.bf16.mxu0 %v1689
    %1711 = vmatpush1.bf16.msra.mxu0 %v1688
    %1712 = vmatprep.subr.bf16.mxu0 %v1687
    %1713 = vmatpush1.bf16.msra.mxu0 %v1686
    %1714 = vmatprep.subr.bf16.mxu0 %v1685
    %1715 = vmatpush1.bf16.msra.mxu0 %v1684
    %1716 = vmatprep.subr.bf16.mxu0 %v1683
    %1717 = vmatpush1.bf16.msra.mxu0 %v1682
    %1718 = vmatprep.subr.bf16.mxu0 %v1681
    %1719 = vmatpush1.bf16.msra.mxu0 %v1680
    %1720 = vmatprep.subr.bf16.mxu0 %v1679
    %1721 = vmatpush1.bf16.msra.mxu0 %v1678
    %1722 = vmatprep.subr.bf16.mxu0 %v1677
    %1723 = vmatpush1.bf16.msra.mxu0 %v1676
    %1724 = vmatprep.subr.bf16.mxu0 0
    %1725 = vmatpush2.bf16.msra.mxu0 0
    %1726 = vmatprep.subr.bf16.mxu0 0
    %1727 = vmatpush2.bf16.msra.mxu0 0
    %1728 = vmatprep.subr.bf16.mxu0 0
    %1729 = vmatpush2.bf16.msra.mxu0 0
    %1730 = vmatprep.subr.bf16.mxu0 0
    %1731 = vmatpush2.bf16.msra.mxu0 0
    %1732 = vmatprep.subr.bf16.mxu0 0
    %1733 = vmatpush2.bf16.msra.mxu0 0
    %1734 = vmatprep.subr.bf16.mxu0 0
    %1735 = vmatpush2.bf16.msra.mxu0 0
    %1736 = vmatprep.subr.bf16.mxu0 0
    %1737 = vmatpush2.bf16.msra.mxu0 0
    %1738 = vmatprep.subr.bf16.mxu0 0
    %1739 = vmatpush2.bf16.msra.mxu0 0
    %1740 = vmatprep.mubr.bf16.mxu0 0
    %1741 = vmatmul.mubr.bf16.gmra.mxu0 %v1599
    %v1742 = vpop.f32.mrf.mxu0
    %v1743 = vadd.f32 %v1621, %v1742
    %v1744 = vpop.f32.mrf.mxu0
    %v1745 = vadd.f32 %v1625, %v1744
    %v1746 = vpop.f32.mrf.mxu0
    %v1747 = vpop.f32.mrf.mxu0
    %1748 = vdwg.mxu0
    %1749 = vst [vmem:[%s23] sm:$0xff] %v1743
    %1750 = vst [vmem:[%s23 + $0x8] sm:$0xff] %v1745
    %v1751 = vmul.f32 %v1745, 0.5
    %v1752 = vmul.f32 %v1751, 1.442695
    %v1753 = vpow.pop %v1752
    %v1754 = vld [vmem:[%s1] sm:$0xff]
    %v1755 = vmul.f32 %v1753, %v1754
    %v1756 = vadd.f32 %v1743, %v1755
    %v1757 = vpack.c.bf16 %v1756, %v1756
    %v1758 = vld [vmem:[%s12] sm:$0xf]
    %v1759 = vld [vmem:[%s12 + $0x4] sm:$0xf]
    %v1760 = vld [vmem:[%s12 + $0x8] sm:$0xf]
    %v1761 = vld [vmem:[%s12 + $0xc] sm:$0xf]
    %v1762 = vld [vmem:[%s12 + $0x10] sm:$0xf]
    %v1763 = vld [vmem:[%s12 + $0x14] sm:$0xf]
    %v1764 = vld [vmem:[%s12 + $0x18] sm:$0xf]
    %v1765 = vld [vmem:[%s12 + $0x1c] sm:$0xf]
    %v1766 = vld [vmem:[%s12 + $0x20] sm:$0xf]
    %v1767 = vld [vmem:[%s12 + $0x24] sm:$0xf]
    %v1768 = vld [vmem:[%s12 + $0x28] sm:$0xf]
    %v1769 = vld [vmem:[%s12 + $0x2c] sm:$0xf]
    %v1770 = vld [vmem:[%s12 + $0x30] sm:$0xf]
    %v1771 = vld [vmem:[%s12 + $0x34] sm:$0xf]
    %v1772 = vld [vmem:[%s12 + $0x38] sm:$0xf]
    %v1773 = vld [vmem:[%s12 + $0x3c] sm:$0xf]
    %v1774 = vld [vmem:[#allocation19] sm:$0x1]
    %v1776 = vlaneseq
    %v1777 = vshrl.u32 %v1776, 7
    %v1778 = vsub.s32 0, %v1777
    %v1779 = vrot.slane %v1774, %v1778
    %v1797 = vunpack.c.l.b16 %v1758
    %v1798 = vunpack.c.l.b16 %v1759
    %v1799 = vunpack.c.l.b16 %v1760
    %v1800 = vunpack.c.l.b16 %v1761
    %v1801 = vunpack.c.l.b16 %v1762
    %v1802 = vunpack.c.l.b16 %v1763
    %v1803 = vunpack.c.l.b16 %v1764
    %v1804 = vunpack.c.l.b16 %v1765
    %v1805 = vunpack.c.l.b16 %v1766
    %v1806 = vunpack.c.l.b16 %v1767
    %v1807 = vunpack.c.l.b16 %v1768
    %v1808 = vunpack.c.l.b16 %v1769
    %v1809 = vunpack.c.l.b16 %v1770
    %v1810 = vunpack.c.l.b16 %v1771
    %v1811 = vunpack.c.l.b16 %v1772
    %v1812 = vunpack.c.l.b16 %v1773
    %v1813 = vpack.c.b16 %v1798, %v1797
    %v1814 = vpack.c.b16 %v1800, %v1799
    %v1815 = vpack.c.b16 %v1802, %v1801
    %v1816 = vpack.c.b16 %v1804, %v1803
    %v1817 = vpack.c.b16 %v1806, %v1805
    %v1818 = vpack.c.b16 %v1808, %v1807
    %v1819 = vpack.c.b16 %v1810, %v1809
    %v1820 = vpack.c.b16 %v1812, %v1811
    %1829 = vmatprep.subr.bf16.mxu0 0
    %1830 = vmatpush1.bf16.msra.mxu0 %v1820
    %1831 = vmatprep.subr.bf16.mxu0 0
    %1832 = vmatpush1.bf16.msra.mxu0 %v1819
    %1833 = vmatprep.subr.bf16.mxu0 0
    %1834 = vmatpush1.bf16.msra.mxu0 %v1818
    %1835 = vmatprep.subr.bf16.mxu0 0
    %1836 = vmatpush1.bf16.msra.mxu0 %v1817
    %1837 = vmatprep.subr.bf16.mxu0 0
    %1838 = vmatpush1.bf16.msra.mxu0 %v1816
    %1839 = vmatprep.subr.bf16.mxu0 0
    %1840 = vmatpush1.bf16.msra.mxu0 %v1815
    %1841 = vmatprep.subr.bf16.mxu0 0
    %1842 = vmatpush1.bf16.msra.mxu0 %v1814
    %1843 = vmatprep.subr.bf16.mxu0 0
    %1844 = vmatpush1.bf16.msra.mxu0 %v1813
    %1845 = vmatprep.subr.bf16.mxu0 0
    %1846 = vmatpush2.bf16.msra.mxu0 0
    %1847 = vmatprep.subr.bf16.mxu0 0
    %1848 = vmatpush2.bf16.msra.mxu0 0
    %1849 = vmatprep.subr.bf16.mxu0 0
    %1850 = vmatpush2.bf16.msra.mxu0 0
    %1851 = vmatprep.subr.bf16.mxu0 0
    %1852 = vmatpush2.bf16.msra.mxu0 0
    %1853 = vmatprep.subr.bf16.mxu0 0
    %1854 = vmatpush2.bf16.msra.mxu0 0
    %1855 = vmatprep.subr.bf16.mxu0 0
    %1856 = vmatpush2.bf16.msra.mxu0 0
    %1857 = vmatprep.subr.bf16.mxu0 0
    %1858 = vmatpush2.bf16.msra.mxu0 0
    %1859 = vmatprep.subr.bf16.mxu0 0
    %1860 = vmatpush2.bf16.msra.mxu0 0
    %1861 = vmatprep.mubr.bf16.mxu0 0
    %1862 = vmatmul.mubr.bf16.gmra.mxu0 %v1757
    %v1863 = vpop.f32.mrf.mxu0
    %v1864 = vadd.f32 %v1779, %v1863
    %v1865 = vpop.f32.mrf.mxu0
    %v1866 = vpop.f32.mrf.mxu0
    %v1867 = vpop.f32.mrf.mxu0
    %1868 = vdwg.mxu0
    %vm1869 = vcmp.gt.f32.partialorder %v1864, 0.0
    %v1870 = vmul.f32 %v1864, 0.2
    %v1871 = vsel %vm1869, %v1864, %v1870
    %v1872 = vpack.c.bf16 %v1871, %v1871
    %v1873 = vld [vmem:[#allocation20] sm:$0xf]
    %v1874 = vld [vmem:[#allocation20 + $0x4] sm:$0xf]
    %v1875 = vld [vmem:[#allocation20 + $0x8] sm:$0xf]
    %v1876 = vld [vmem:[#allocation20 + $0xc] sm:$0xf]
    %v1877 = vld [vmem:[#allocation20 + $0x10] sm:$0xf]
    %v1878 = vld [vmem:[#allocation20 + $0x14] sm:$0xf]
    %v1879 = vld [vmem:[#allocation20 + $0x18] sm:$0xf]
    %v1880 = vld [vmem:[#allocation20 + $0x1c] sm:$0xf]
    %v1881 = vld [vmem:[#allocation20 + $0x20] sm:$0xf]
    %v1882 = vld [vmem:[#allocation20 + $0x24] sm:$0xf]
    %v1883 = vld [vmem:[#allocation20 + $0x28] sm:$0xf]
    %v1884 = vld [vmem:[#allocation20 + $0x2c] sm:$0xf]
    %v1885 = vld [vmem:[#allocation20 + $0x30] sm:$0xf]
    %v1886 = vld [vmem:[#allocation20 + $0x34] sm:$0xf]
    %v1887 = vld [vmem:[#allocation20 + $0x38] sm:$0xf]
    %v1888 = vld [vmem:[#allocation20 + $0x3c] sm:$0xf]
    %v1889 = vld [vmem:[#allocation22] sm:$0x1]
    %v1891 = vlaneseq
    %v1892 = vshrl.u32 %v1891, 7
    %v1893 = vsub.s32 0, %v1892
    %v1894 = vrot.slane %v1889, %v1893
    %v1912 = vunpack.c.l.b16 %v1873
    %v1913 = vunpack.c.l.b16 %v1874
    %v1914 = vunpack.c.l.b16 %v1875
    %v1915 = vunpack.c.l.b16 %v1876
    %v1916 = vunpack.c.l.b16 %v1877
    %v1917 = vunpack.c.l.b16 %v1878
    %v1918 = vunpack.c.l.b16 %v1879
    %v1919 = vunpack.c.l.b16 %v1880
    %v1920 = vunpack.c.l.b16 %v1881
    %v1921 = vunpack.c.l.b16 %v1882
    %v1922 = vunpack.c.l.b16 %v1883
    %v1923 = vunpack.c.l.b16 %v1884
    %v1924 = vunpack.c.l.b16 %v1885
    %v1925 = vunpack.c.l.b16 %v1886
    %v1926 = vunpack.c.l.b16 %v1887
    %v1927 = vunpack.c.l.b16 %v1888
    %v1928 = vpack.c.b16 %v1913, %v1912
    %v1929 = vpack.c.b16 %v1915, %v1914
    %v1930 = vpack.c.b16 %v1917, %v1916
    %v1931 = vpack.c.b16 %v1919, %v1918
    %v1932 = vpack.c.b16 %v1921, %v1920
    %v1933 = vpack.c.b16 %v1923, %v1922
    %v1934 = vpack.c.b16 %v1925, %v1924
    %v1935 = vpack.c.b16 %v1927, %v1926
    %1944 = vmatprep.subr.bf16.mxu0 0
    %1945 = vmatpush1.bf16.msra.mxu0 %v1935
    %1946 = vmatprep.subr.bf16.mxu0 0
    %1947 = vmatpush1.bf16.msra.mxu0 %v1934
    %1948 = vmatprep.subr.bf16.mxu0 0
    %1949 = vmatpush1.bf16.msra.mxu0 %v1933
    %1950 = vmatprep.subr.bf16.mxu0 0
    %1951 = vmatpush1.bf16.msra.mxu0 %v1932
    %1952 = vmatprep.subr.bf16.mxu0 0
    %1953 = vmatpush1.bf16.msra.mxu0 %v1931
    %1954 = vmatprep.subr.bf16.mxu0 0
    %1955 = vmatpush1.bf16.msra.mxu0 %v1930
    %1956 = vmatprep.subr.bf16.mxu0 0
    %1957 = vmatpush1.bf16.msra.mxu0 %v1929
    %1958 = vmatprep.subr.bf16.mxu0 0
    %1959 = vmatpush1.bf16.msra.mxu0 %v1928
    %1960 = vmatprep.subr.bf16.mxu0 0
    %1961 = vmatpush2.bf16.msra.mxu0 0
    %1962 = vmatprep.subr.bf16.mxu0 0
    %1963 = vmatpush2.bf16.msra.mxu0 0
    %1964 = vmatprep.subr.bf16.mxu0 0
    %1965 = vmatpush2.bf16.msra.mxu0 0
    %1966 = vmatprep.subr.bf16.mxu0 0
    %1967 = vmatpush2.bf16.msra.mxu0 0
    %1968 = vmatprep.subr.bf16.mxu0 0
    %1969 = vmatpush2.bf16.msra.mxu0 0
    %1970 = vmatprep.subr.bf16.mxu0 0
    %1971 = vmatpush2.bf16.msra.mxu0 0
    %1972 = vmatprep.subr.bf16.mxu0 0
    %1973 = vmatpush2.bf16.msra.mxu0 0
    %1974 = vmatprep.subr.bf16.mxu0 0
    %1975 = vmatpush2.bf16.msra.mxu0 0
    %1976 = vmatprep.mubr.bf16.mxu0 0
    %1977 = vmatmul.mubr.bf16.gmra.mxu0 %v1872
    %v1978 = vpop.f32.mrf.mxu0
    %v1979 = vadd.f32 %v1894, %v1978
    %v1980 = vpop.f32.mrf.mxu0
    %v1981 = vpop.f32.mrf.mxu0
    %v1982 = vpop.f32.mrf.mxu0
    %1983 = vdwg.mxu0
    %vm1984 = vcmp.gt.f32.partialorder %v1979, 0.0
    %v1985 = vmul.f32 %v1979, 0.2
    %v1986 = vsel %vm1984, %v1979, %v1985
    %v1987 = vpack.c.bf16 %v1986, %v1986
    %v1988 = vld [vmem:[#allocation23] sm:$0xff]
    %v1989 = vld [vmem:[#allocation23 + $0x8] sm:$0xff]
    %v1990 = vld [vmem:[#allocation23 + $0x10] sm:$0xff]
    %v1991 = vld [vmem:[#allocation23 + $0x18] sm:$0xff]
    %v1992 = vld [vmem:[#allocation23 + $0x20] sm:$0xff]
    %v1993 = vld [vmem:[#allocation23 + $0x28] sm:$0xff]
    %v1994 = vld [vmem:[#allocation23 + $0x30] sm:$0xff]
    %v1995 = vld [vmem:[#allocation23 + $0x38] sm:$0xff]
    %v1996 = vld [vmem:[#allocation23 + $0x40] sm:$0xff]
    %v1997 = vld [vmem:[#allocation23 + $0x48] sm:$0xff]
    %v1998 = vld [vmem:[#allocation23 + $0x50] sm:$0xff]
    %v1999 = vld [vmem:[#allocation23 + $0x58] sm:$0xff]
    %v2000 = vld [vmem:[#allocation23 + $0x60] sm:$0xff]
    %v2001 = vld [vmem:[#allocation23 + $0x68] sm:$0xff]
    %v2002 = vld [vmem:[#allocation23 + $0x70] sm:$0xff]
    %v2003 = vld [vmem:[#allocation23 + $0x78] sm:$0xff]
    %v2004 = vld [vmem:[#allocation25] sm:$0x3]
    %v2006 = vlaneseq
    %v2007 = vshrl.u32 %v2006, 7
    %v2008 = vsub.s32 0, %v2007
    %v2009 = vrot.slane %v2004, %v2008
    %v2010 = vlaneseq
    %v2011 = vshrl.u32 %v2010, 7
    %v2012 = vsub.s32 1, %v2011
    %v2013 = vrot.slane %v2004, %v2012
    %v2032 = vunpack.c.l.b16 %v1988
    %v2033 = vunpack.c.h.b16 %v1988
    %v2034 = vunpack.c.l.b16 %v1989
    %v2035 = vunpack.c.h.b16 %v1989
    %v2036 = vunpack.c.l.b16 %v1990
    %v2037 = vunpack.c.h.b16 %v1990
    %v2038 = vunpack.c.l.b16 %v1991
    %v2039 = vunpack.c.h.b16 %v1991
    %v2040 = vunpack.c.l.b16 %v1992
    %v2041 = vunpack.c.h.b16 %v1992
    %v2042 = vunpack.c.l.b16 %v1993
    %v2043 = vunpack.c.h.b16 %v1993
    %v2044 = vunpack.c.l.b16 %v1994
    %v2045 = vunpack.c.h.b16 %v1994
    %v2046 = vunpack.c.l.b16 %v1995
    %v2047 = vunpack.c.h.b16 %v1995
    %v2048 = vunpack.c.l.b16 %v1996
    %v2049 = vunpack.c.h.b16 %v1996
    %v2050 = vunpack.c.l.b16 %v1997
    %v2051 = vunpack.c.h.b16 %v1997
    %v2052 = vunpack.c.l.b16 %v1998
    %v2053 = vunpack.c.h.b16 %v1998
    %v2054 = vunpack.c.l.b16 %v1999
    %v2055 = vunpack.c.h.b16 %v1999
    %v2056 = vunpack.c.l.b16 %v2000
    %v2057 = vunpack.c.h.b16 %v2000
    %v2058 = vunpack.c.l.b16 %v2001
    %v2059 = vunpack.c.h.b16 %v2001
    %v2060 = vunpack.c.l.b16 %v2002
    %v2061 = vunpack.c.h.b16 %v2002
    %v2062 = vunpack.c.l.b16 %v2003
    %v2063 = vunpack.c.h.b16 %v2003
    %v2064 = vpack.c.b16 %v2034, %v2032
    %v2065 = vpack.c.b16 %v2035, %v2033
    %v2066 = vpack.c.b16 %v2038, %v2036
    %v2067 = vpack.c.b16 %v2039, %v2037
    %v2068 = vpack.c.b16 %v2042, %v2040
    %v2069 = vpack.c.b16 %v2043, %v2041
    %v2070 = vpack.c.b16 %v2046, %v2044
    %v2071 = vpack.c.b16 %v2047, %v2045
    %v2072 = vpack.c.b16 %v2050, %v2048
    %v2073 = vpack.c.b16 %v2051, %v2049
    %v2074 = vpack.c.b16 %v2054, %v2052
    %v2075 = vpack.c.b16 %v2055, %v2053
    %v2076 = vpack.c.b16 %v2058, %v2056
    %v2077 = vpack.c.b16 %v2059, %v2057
    %v2078 = vpack.c.b16 %v2062, %v2060
    %v2079 = vpack.c.b16 %v2063, %v2061
    %2096 = vmatprep.subr.bf16.mxu0 %v2079
    %2097 = vmatpush1.bf16.msra.mxu0 %v2078
    %2098 = vmatprep.subr.bf16.mxu0 %v2077
    %2099 = vmatpush1.bf16.msra.mxu0 %v2076
    %2100 = vmatprep.subr.bf16.mxu0 %v2075
    %2101 = vmatpush1.bf16.msra.mxu0 %v2074
    %2102 = vmatprep.subr.bf16.mxu0 %v2073
    %2103 = vmatpush1.bf16.msra.mxu0 %v2072
    %2104 = vmatprep.subr.bf16.mxu0 %v2071
    %2105 = vmatpush1.bf16.msra.mxu0 %v2070
    %2106 = vmatprep.subr.bf16.mxu0 %v2069
    %2107 = vmatpush1.bf16.msra.mxu0 %v2068
    %2108 = vmatprep.subr.bf16.mxu0 %v2067
    %2109 = vmatpush1.bf16.msra.mxu0 %v2066
    %2110 = vmatprep.subr.bf16.mxu0 %v2065
    %2111 = vmatpush1.bf16.msra.mxu0 %v2064
    %2112 = vmatprep.subr.bf16.mxu0 0
    %2113 = vmatpush2.bf16.msra.mxu0 0
    %2114 = vmatprep.subr.bf16.mxu0 0
    %2115 = vmatpush2.bf16.msra.mxu0 0
    %2116 = vmatprep.subr.bf16.mxu0 0
    %2117 = vmatpush2.bf16.msra.mxu0 0
    %2118 = vmatprep.subr.bf16.mxu0 0
    %2119 = vmatpush2.bf16.msra.mxu0 0
    %2120 = vmatprep.subr.bf16.mxu0 0
    %2121 = vmatpush2.bf16.msra.mxu0 0
    %2122 = vmatprep.subr.bf16.mxu0 0
    %2123 = vmatpush2.bf16.msra.mxu0 0
    %2124 = vmatprep.subr.bf16.mxu0 0
    %2125 = vmatpush2.bf16.msra.mxu0 0
    %2126 = vmatprep.subr.bf16.mxu0 0
    %2127 = vmatpush2.bf16.msra.mxu0 0
    %2128 = vmatprep.mubr.bf16.mxu0 0
    %2129 = vmatmul.mubr.bf16.gmra.mxu0 %v1987
    %v2130 = vpop.f32.mrf.mxu0
    %v2131 = vadd.f32 %v2009, %v2130
    %v2132 = vpop.f32.mrf.mxu0
    %v2133 = vadd.f32 %v2013, %v2132
    %v2134 = vpop.f32.mrf.mxu0
    %v2135 = vpop.f32.mrf.mxu0
    %2136 = vdwg.mxu0
    %vm2137 = vcmp.gt.f32.partialorder %v2131, 0.0
    %vm2138 = vcmp.gt.f32.partialorder %v2133, 0.0
    %v2139 = vmul.f32 %v2131, 0.2
    %v2140 = vmul.f32 %v2133, 0.2
    %v2141 = vsel %vm2137, %v2131, %v2139
    %v2142 = vsel %vm2138, %v2133, %v2140
    %v2143 = vpack.c.bf16 %v2141, %v2141
    %v2144 = vpack.c.bf16 %v2142, %v2142
    %v2145 = vld [vmem:[#allocation26] sm:$0xff]
    %v2146 = vld [vmem:[#allocation26 + $0x8] sm:$0xff]
    %v2147 = vld [vmem:[#allocation26 + $0x10] sm:$0xff]
    %v2148 = vld [vmem:[#allocation26 + $0x18] sm:$0xff]
    %v2149 = vld [vmem:[#allocation26 + $0x20] sm:$0xff]
    %v2150 = vld [vmem:[#allocation26 + $0x28] sm:$0xff]
    %v2151 = vld [vmem:[#allocation26 + $0x30] sm:$0xff]
    %v2152 = vld [vmem:[#allocation26 + $0x38] sm:$0xff]
    %v2153 = vld [vmem:[#allocation26 + $0x40] sm:$0xff]
    %v2154 = vld [vmem:[#allocation26 + $0x48] sm:$0xff]
    %v2155 = vld [vmem:[#allocation26 + $0x50] sm:$0xff]
    %v2156 = vld [vmem:[#allocation26 + $0x58] sm:$0xff]
    %v2157 = vld [vmem:[#allocation26 + $0x60] sm:$0xff]
    %v2158 = vld [vmem:[#allocation26 + $0x68] sm:$0xff]
    %v2159 = vld [vmem:[#allocation26 + $0x70] sm:$0xff]
    %v2160 = vld [vmem:[#allocation26 + $0x78] sm:$0xff]
    %v2161 = vld [vmem:[#allocation26 + $0x80] sm:$0xff]
    %v2162 = vld [vmem:[#allocation26 + $0x88] sm:$0xff]
    %v2163 = vld [vmem:[#allocation26 + $0x90] sm:$0xff]
    %v2164 = vld [vmem:[#allocation26 + $0x98] sm:$0xff]
    %v2165 = vld [vmem:[#allocation26 + $0xa0] sm:$0xff]
    %v2166 = vld [vmem:[#allocation26 + $0xa8] sm:$0xff]
    %v2167 = vld [vmem:[#allocation26 + $0xb0] sm:$0xff]
    %v2168 = vld [vmem:[#allocation26 + $0xb8] sm:$0xff]
    %v2169 = vld [vmem:[#allocation26 + $0xc0] sm:$0xff]
    %v2170 = vld [vmem:[#allocation26 + $0xc8] sm:$0xff]
    %v2171 = vld [vmem:[#allocation26 + $0xd0] sm:$0xff]
    %v2172 = vld [vmem:[#allocation26 + $0xd8] sm:$0xff]
    %v2173 = vld [vmem:[#allocation26 + $0xe0] sm:$0xff]
    %v2174 = vld [vmem:[#allocation26 + $0xe8] sm:$0xff]
    %v2175 = vld [vmem:[#allocation26 + $0xf0] sm:$0xff]
    %v2176 = vld [vmem:[#allocation26 + $0xf8] sm:$0xff]
    %v2177 = vld [vmem:[#allocation26 + $0x100] sm:$0xff]
    %v2178 = vld [vmem:[#allocation26 + $0x108] sm:$0xff]
    %v2179 = vld [vmem:[#allocation26 + $0x110] sm:$0xff]
    %v2180 = vld [vmem:[#allocation26 + $0x118] sm:$0xff]
    %v2181 = vld [vmem:[#allocation26 + $0x120] sm:$0xff]
    %v2182 = vld [vmem:[#allocation26 + $0x128] sm:$0xff]
    %v2183 = vld [vmem:[#allocation26 + $0x130] sm:$0xff]
    %v2184 = vld [vmem:[#allocation26 + $0x138] sm:$0xff]
    %v2185 = vld [vmem:[#allocation26 + $0x140] sm:$0xff]
    %v2186 = vld [vmem:[#allocation26 + $0x148] sm:$0xff]
    %v2187 = vld [vmem:[#allocation26 + $0x150] sm:$0xff]
    %v2188 = vld [vmem:[#allocation26 + $0x158] sm:$0xff]
    %v2189 = vld [vmem:[#allocation26 + $0x160] sm:$0xff]
    %v2190 = vld [vmem:[#allocation26 + $0x168] sm:$0xff]
    %v2191 = vld [vmem:[#allocation26 + $0x170] sm:$0xff]
    %v2192 = vld [vmem:[#allocation26 + $0x178] sm:$0xff]
    %v2193 = vld [vmem:[#allocation26 + $0x180] sm:$0xff]
    %v2194 = vld [vmem:[#allocation26 + $0x188] sm:$0xff]
    %v2195 = vld [vmem:[#allocation26 + $0x190] sm:$0xff]
    %v2196 = vld [vmem:[#allocation26 + $0x198] sm:$0xff]
    %v2197 = vld [vmem:[#allocation26 + $0x1a0] sm:$0xff]
    %v2198 = vld [vmem:[#allocation26 + $0x1a8] sm:$0xff]
    %v2199 = vld [vmem:[#allocation26 + $0x1b0] sm:$0xff]
    %v2200 = vld [vmem:[#allocation26 + $0x1b8] sm:$0xff]
    %v2201 = vld [vmem:[#allocation26 + $0x1c0] sm:$0xff]
    %v2202 = vld [vmem:[#allocation26 + $0x1c8] sm:$0xff]
    %v2203 = vld [vmem:[#allocation26 + $0x1d0] sm:$0xff]
    %v2204 = vld [vmem:[#allocation26 + $0x1d8] sm:$0xff]
    %v2205 = vld [vmem:[#allocation26 + $0x1e0] sm:$0xff]
    %v2206 = vld [vmem:[#allocation26 + $0x1e8] sm:$0xff]
    %v2207 = vld [vmem:[#allocation26 + $0x1f0] sm:$0xff]
    %v2208 = vld [vmem:[#allocation26 + $0x1f8] sm:$0xff]
    %v2209 = vld [vmem:[#allocation28] sm:$0xf]
    %v2211 = vlaneseq
    %v2212 = vshrl.u32 %v2211, 7
    %v2213 = vsub.s32 0, %v2212
    %v2214 = vrot.slane %v2209, %v2213
    %v2215 = vlaneseq
    %v2216 = vshrl.u32 %v2215, 7
    %v2217 = vsub.s32 1, %v2216
    %v2218 = vrot.slane %v2209, %v2217
    %v2219 = vlaneseq
    %v2220 = vshrl.u32 %v2219, 7
    %v2221 = vsub.s32 2, %v2220
    %v2222 = vrot.slane %v2209, %v2221
    %v2223 = vlaneseq
    %v2224 = vshrl.u32 %v2223, 7
    %v2225 = vsub.s32 3, %v2224
    %v2226 = vrot.slane %v2209, %v2225
    %v2295 = vunpack.c.l.b16 %v2145
    %v2296 = vunpack.c.h.b16 %v2145
    %v2297 = vunpack.c.l.b16 %v2146
    %v2298 = vunpack.c.h.b16 %v2146
    %v2299 = vunpack.c.l.b16 %v2147
    %v2300 = vunpack.c.h.b16 %v2147
    %v2301 = vunpack.c.l.b16 %v2148
    %v2302 = vunpack.c.h.b16 %v2148
    %v2303 = vunpack.c.l.b16 %v2149
    %v2304 = vunpack.c.h.b16 %v2149
    %v2305 = vunpack.c.l.b16 %v2150
    %v2306 = vunpack.c.h.b16 %v2150
    %v2307 = vunpack.c.l.b16 %v2151
    %v2308 = vunpack.c.h.b16 %v2151
    %v2309 = vunpack.c.l.b16 %v2152
    %v2310 = vunpack.c.h.b16 %v2152
    %v2311 = vunpack.c.l.b16 %v2153
    %v2312 = vunpack.c.h.b16 %v2153
    %v2313 = vunpack.c.l.b16 %v2154
    %v2314 = vunpack.c.h.b16 %v2154
    %v2315 = vunpack.c.l.b16 %v2155
    %v2316 = vunpack.c.h.b16 %v2155
    %v2317 = vunpack.c.l.b16 %v2156
    %v2318 = vunpack.c.h.b16 %v2156
    %v2319 = vunpack.c.l.b16 %v2157
    %v2320 = vunpack.c.h.b16 %v2157
    %v2321 = vunpack.c.l.b16 %v2158
    %v2322 = vunpack.c.h.b16 %v2158
    %v2323 = vunpack.c.l.b16 %v2159
    %v2324 = vunpack.c.h.b16 %v2159
    %v2325 = vunpack.c.l.b16 %v2160
    %v2326 = vunpack.c.h.b16 %v2160
    %v2327 = vunpack.c.l.b16 %v2161
    %v2328 = vunpack.c.h.b16 %v2161
    %v2329 = vunpack.c.l.b16 %v2162
    %v2330 = vunpack.c.h.b16 %v2162
    %v2331 = vunpack.c.l.b16 %v2163
    %v2332 = vunpack.c.h.b16 %v2163
    %v2333 = vunpack.c.l.b16 %v2164
    %v2334 = vunpack.c.h.b16 %v2164
    %v2335 = vunpack.c.l.b16 %v2165
    %v2336 = vunpack.c.h.b16 %v2165
    %v2337 = vunpack.c.l.b16 %v2166
    %v2338 = vunpack.c.h.b16 %v2166
    %v2339 = vunpack.c.l.b16 %v2167
    %v2340 = vunpack.c.h.b16 %v2167
    %v2341 = vunpack.c.l.b16 %v2168
    %v2342 = vunpack.c.h.b16 %v2168
    %v2343 = vunpack.c.l.b16 %v2169
    %v2344 = vunpack.c.h.b16 %v2169
    %v2345 = vunpack.c.l.b16 %v2170
    %v2346 = vunpack.c.h.b16 %v2170
    %v2347 = vunpack.c.l.b16 %v2171
    %v2348 = vunpack.c.h.b16 %v2171
    %v2349 = vunpack.c.l.b16 %v2172
    %v2350 = vunpack.c.h.b16 %v2172
    %v2351 = vunpack.c.l.b16 %v2173
    %v2352 = vunpack.c.h.b16 %v2173
    %v2353 = vunpack.c.l.b16 %v2174
    %v2354 = vunpack.c.h.b16 %v2174
    %v2355 = vunpack.c.l.b16 %v2175
    %v2356 = vunpack.c.h.b16 %v2175
    %v2357 = vunpack.c.l.b16 %v2176
    %v2358 = vunpack.c.h.b16 %v2176
    %v2359 = vunpack.c.l.b16 %v2177
    %v2360 = vunpack.c.h.b16 %v2177
    %v2361 = vunpack.c.l.b16 %v2178
    %v2362 = vunpack.c.h.b16 %v2178
    %v2363 = vunpack.c.l.b16 %v2179
    %v2364 = vunpack.c.h.b16 %v2179
    %v2365 = vunpack.c.l.b16 %v2180
    %v2366 = vunpack.c.h.b16 %v2180
    %v2367 = vunpack.c.l.b16 %v2181
    %v2368 = vunpack.c.h.b16 %v2181
    %v2369 = vunpack.c.l.b16 %v2182
    %v2370 = vunpack.c.h.b16 %v2182
    %v2371 = vunpack.c.l.b16 %v2183
    %v2372 = vunpack.c.h.b16 %v2183
    %v2373 = vunpack.c.l.b16 %v2184
    %v2374 = vunpack.c.h.b16 %v2184
    %v2375 = vunpack.c.l.b16 %v2185
    %v2376 = vunpack.c.h.b16 %v2185
    %v2377 = vunpack.c.l.b16 %v2186
    %v2378 = vunpack.c.h.b16 %v2186
    %v2379 = vunpack.c.l.b16 %v2187
    %v2380 = vunpack.c.h.b16 %v2187
    %v2381 = vunpack.c.l.b16 %v2188
    %v2382 = vunpack.c.h.b16 %v2188
    %v2383 = vunpack.c.l.b16 %v2189
    %v2384 = vunpack.c.h.b16 %v2189
    %v2385 = vunpack.c.l.b16 %v2190
    %v2386 = vunpack.c.h.b16 %v2190
    %v2387 = vunpack.c.l.b16 %v2191
    %v2388 = vunpack.c.h.b16 %v2191
    %v2389 = vunpack.c.l.b16 %v2192
    %v2390 = vunpack.c.h.b16 %v2192
    %v2391 = vunpack.c.l.b16 %v2193
    %v2392 = vunpack.c.h.b16 %v2193
    %v2393 = vunpack.c.l.b16 %v2194
    %v2394 = vunpack.c.h.b16 %v2194
    %v2395 = vunpack.c.l.b16 %v2195
    %v2396 = vunpack.c.h.b16 %v2195
    %v2397 = vunpack.c.l.b16 %v2196
    %v2398 = vunpack.c.h.b16 %v2196
    %v2399 = vunpack.c.l.b16 %v2197
    %v2400 = vunpack.c.h.b16 %v2197
    %v2401 = vunpack.c.l.b16 %v2198
    %v2402 = vunpack.c.h.b16 %v2198
    %v2403 = vunpack.c.l.b16 %v2199
    %v2404 = vunpack.c.h.b16 %v2199
    %v2405 = vunpack.c.l.b16 %v2200
    %v2406 = vunpack.c.h.b16 %v2200
    %v2407 = vunpack.c.l.b16 %v2201
    %v2408 = vunpack.c.h.b16 %v2201
    %v2409 = vunpack.c.l.b16 %v2202
    %v2410 = vunpack.c.h.b16 %v2202
    %v2411 = vunpack.c.l.b16 %v2203
    %v2412 = vunpack.c.h.b16 %v2203
    %v2413 = vunpack.c.l.b16 %v2204
    %v2414 = vunpack.c.h.b16 %v2204
    %v2415 = vunpack.c.l.b16 %v2205
    %v2416 = vunpack.c.h.b16 %v2205
    %v2417 = vunpack.c.l.b16 %v2206
    %v2418 = vunpack.c.h.b16 %v2206
    %v2419 = vunpack.c.l.b16 %v2207
    %v2420 = vunpack.c.h.b16 %v2207
    %v2421 = vunpack.c.l.b16 %v2208
    %v2422 = vunpack.c.h.b16 %v2208
    %v2423 = vpack.c.b16 %v2299, %v2295
    %v2424 = vpack.c.b16 %v2300, %v2296
    %v2425 = vpack.c.b16 %v2301, %v2297
    %v2426 = vpack.c.b16 %v2302, %v2298
    %v2427 = vpack.c.b16 %v2307, %v2303
    %v2428 = vpack.c.b16 %v2308, %v2304
    %v2429 = vpack.c.b16 %v2309, %v2305
    %v2430 = vpack.c.b16 %v2310, %v2306
    %v2431 = vpack.c.b16 %v2315, %v2311
    %v2432 = vpack.c.b16 %v2316, %v2312
    %v2433 = vpack.c.b16 %v2317, %v2313
    %v2434 = vpack.c.b16 %v2318, %v2314
    %v2435 = vpack.c.b16 %v2323, %v2319
    %v2436 = vpack.c.b16 %v2324, %v2320
    %v2437 = vpack.c.b16 %v2325, %v2321
    %v2438 = vpack.c.b16 %v2326, %v2322
    %v2439 = vpack.c.b16 %v2331, %v2327
    %v2440 = vpack.c.b16 %v2332, %v2328
    %v2441 = vpack.c.b16 %v2333, %v2329
    %v2442 = vpack.c.b16 %v2334, %v2330
    %v2443 = vpack.c.b16 %v2339, %v2335
    %v2444 = vpack.c.b16 %v2340, %v2336
    %v2445 = vpack.c.b16 %v2341, %v2337
    %v2446 = vpack.c.b16 %v2342, %v2338
    %v2447 = vpack.c.b16 %v2347, %v2343
    %v2448 = vpack.c.b16 %v2348, %v2344
    %v2449 = vpack.c.b16 %v2349, %v2345
    %v2450 = vpack.c.b16 %v2350, %v2346
    %v2451 = vpack.c.b16 %v2355, %v2351
    %v2452 = vpack.c.b16 %v2356, %v2352
    %v2453 = vpack.c.b16 %v2357, %v2353
    %v2454 = vpack.c.b16 %v2358, %v2354
    %v2455 = vpack.c.b16 %v2363, %v2359
    %v2456 = vpack.c.b16 %v2364, %v2360
    %v2457 = vpack.c.b16 %v2365, %v2361
    %v2458 = vpack.c.b16 %v2366, %v2362
    %v2459 = vpack.c.b16 %v2371, %v2367
    %v2460 = vpack.c.b16 %v2372, %v2368
    %v2461 = vpack.c.b16 %v2373, %v2369
    %v2462 = vpack.c.b16 %v2374, %v2370
    %v2463 = vpack.c.b16 %v2379, %v2375
    %v2464 = vpack.c.b16 %v2380, %v2376
    %v2465 = vpack.c.b16 %v2381, %v2377
    %v2466 = vpack.c.b16 %v2382, %v2378
    %v2467 = vpack.c.b16 %v2387, %v2383
    %v2468 = vpack.c.b16 %v2388, %v2384
    %v2469 = vpack.c.b16 %v2389, %v2385
    %v2470 = vpack.c.b16 %v2390, %v2386
    %v2471 = vpack.c.b16 %v2395, %v2391
    %v2472 = vpack.c.b16 %v2396, %v2392
    %v2473 = vpack.c.b16 %v2397, %v2393
    %v2474 = vpack.c.b16 %v2398, %v2394
    %v2475 = vpack.c.b16 %v2403, %v2399
    %v2476 = vpack.c.b16 %v2404, %v2400
    %v2477 = vpack.c.b16 %v2405, %v2401
    %v2478 = vpack.c.b16 %v2406, %v2402
    %v2479 = vpack.c.b16 %v2411, %v2407
    %v2480 = vpack.c.b16 %v2412, %v2408
    %v2481 = vpack.c.b16 %v2413, %v2409
    %v2482 = vpack.c.b16 %v2414, %v2410
    %v2483 = vpack.c.b16 %v2419, %v2415
    %v2484 = vpack.c.b16 %v2420, %v2416
    %v2485 = vpack.c.b16 %v2421, %v2417
    %v2486 = vpack.c.b16 %v2422, %v2418
    %2551 = vmatprep.subr.bf16.mxu0 %v2452
    %2552 = vmatpush1.bf16.msra.mxu0 %v2451
    %2553 = vmatprep.subr.bf16.mxu0 %v2448
    %2554 = vmatpush1.bf16.msra.mxu0 %v2447
    %2555 = vmatprep.subr.bf16.mxu0 %v2444
    %2556 = vmatpush1.bf16.msra.mxu0 %v2443
    %2557 = vmatprep.subr.bf16.mxu0 %v2440
    %2558 = vmatpush1.bf16.msra.mxu0 %v2439
    %2559 = vmatprep.subr.bf16.mxu0 %v2436
    %2560 = vmatpush1.bf16.msra.mxu0 %v2435
    %2561 = vmatprep.subr.bf16.mxu0 %v2432
    %2562 = vmatpush1.bf16.msra.mxu0 %v2431
    %2563 = vmatprep.subr.bf16.mxu0 %v2428
    %2564 = vmatpush1.bf16.msra.mxu0 %v2427
    %2565 = vmatprep.subr.bf16.mxu0 %v2424
    %2566 = vmatpush1.bf16.msra.mxu0 %v2423
    %2567 = vmatprep.subr.bf16.mxu0 %v2484
    %2568 = vmatpush2.bf16.msra.mxu0 %v2483
    %2569 = vmatprep.subr.bf16.mxu0 %v2480
    %2570 = vmatpush2.bf16.msra.mxu0 %v2479
    %2571 = vmatprep.subr.bf16.mxu0 %v2476
    %2572 = vmatpush2.bf16.msra.mxu0 %v2475
    %2573 = vmatprep.subr.bf16.mxu0 %v2472
    %2574 = vmatpush2.bf16.msra.mxu0 %v2471
    %2575 = vmatprep.subr.bf16.mxu0 %v2468
    %2576 = vmatpush2.bf16.msra.mxu0 %v2467
    %2577 = vmatprep.subr.bf16.mxu0 %v2464
    %2578 = vmatpush2.bf16.msra.mxu0 %v2463
    %2579 = vmatprep.subr.bf16.mxu0 %v2460
    %2580 = vmatpush2.bf16.msra.mxu0 %v2459
    %2581 = vmatprep.subr.bf16.mxu0 %v2456
    %2582 = vmatpush2.bf16.msra.mxu0 %v2455
    %2583 = vmatprep.mubr.bf16.mxu0 %v2144
    %2584 = vmatmul.mubr.bf16.gmra.mxu0 %v2143
    %v2585 = vpop.f32.mrf.mxu0
    %v2586 = vadd.f32 %v2214, %v2585
    %v2587 = vpop.f32.mrf.mxu0
    %v2588 = vadd.f32 %v2218, %v2587
    %v2589 = vpop.f32.mrf.mxu0
    %v2590 = vpop.f32.mrf.mxu0
    %2591 = vdwg.mxu0
    %2592 = vmatprep.subr.bf16.mxu0 %v2454
    %2593 = vmatpush1.bf16.msra.mxu0 %v2453
    %2594 = vmatprep.subr.bf16.mxu0 %v2450
    %2595 = vmatpush1.bf16.msra.mxu0 %v2449
    %2596 = vmatprep.subr.bf16.mxu0 %v2446
    %2597 = vmatpush1.bf16.msra.mxu0 %v2445
    %2598 = vmatprep.subr.bf16.mxu0 %v2442
    %2599 = vmatpush1.bf16.msra.mxu0 %v2441
    %2600 = vmatprep.subr.bf16.mxu0 %v2438
    %2601 = vmatpush1.bf16.msra.mxu0 %v2437
    %2602 = vmatprep.subr.bf16.mxu0 %v2434
    %2603 = vmatpush1.bf16.msra.mxu0 %v2433
    %2604 = vmatprep.subr.bf16.mxu0 %v2430
    %2605 = vmatpush1.bf16.msra.mxu0 %v2429
    %2606 = vmatprep.subr.bf16.mxu0 %v2426
    %2607 = vmatpush1.bf16.msra.mxu0 %v2425
    %2608 = vmatprep.subr.bf16.mxu0 %v2486
    %2609 = vmatpush2.bf16.msra.mxu0 %v2485
    %2610 = vmatprep.subr.bf16.mxu0 %v2482
    %2611 = vmatpush2.bf16.msra.mxu0 %v2481
    %2612 = vmatprep.subr.bf16.mxu0 %v2478
    %2613 = vmatpush2.bf16.msra.mxu0 %v2477
    %2614 = vmatprep.subr.bf16.mxu0 %v2474
    %2615 = vmatpush2.bf16.msra.mxu0 %v2473
    %2616 = vmatprep.subr.bf16.mxu0 %v2470
    %2617 = vmatpush2.bf16.msra.mxu0 %v2469
    %2618 = vmatprep.subr.bf16.mxu0 %v2466
    %2619 = vmatpush2.bf16.msra.mxu0 %v2465
    %2620 = vmatprep.subr.bf16.mxu0 %v2462
    %2621 = vmatpush2.bf16.msra.mxu0 %v2461
    %2622 = vmatprep.subr.bf16.mxu0 %v2458
    %2623 = vmatpush2.bf16.msra.mxu0 %v2457
    %2624 = vmatprep.mubr.bf16.mxu0 %v2144
    %2625 = vmatmul.mubr.bf16.gmra.mxu0 %v2143
    %v2626 = vpop.f32.mrf.mxu0
    %v2627 = vadd.f32 %v2222, %v2626
    %v2628 = vpop.f32.mrf.mxu0
    %v2629 = vadd.f32 %v2226, %v2628
    %v2630 = vpop.f32.mrf.mxu0
    %v2631 = vpop.f32.mrf.mxu0
    %2632 = vdwg.mxu0
    %vm2633 = vcmp.gt.f32.partialorder %v2586, 0.0
    %vm2634 = vcmp.gt.f32.partialorder %v2588, 0.0
    %vm2635 = vcmp.gt.f32.partialorder %v2627, 0.0
    %vm2636 = vcmp.gt.f32.partialorder %v2629, 0.0
    %v2637 = vmul.f32 %v2586, 0.2
    %v2638 = vmul.f32 %v2588, 0.2
    %v2639 = vmul.f32 %v2627, 0.2
    %v2640 = vmul.f32 %v2629, 0.2
    %v2641 = vsel %vm2633, %v2586, %v2637
    %v2642 = vsel %vm2634, %v2588, %v2638
    %v2643 = vsel %vm2635, %v2627, %v2639
    %v2644 = vsel %vm2636, %v2629, %v2640
    %v2645 = vpack.c.bf16 %v2641, %v2641
    %v2646 = vpack.c.bf16 %v2642, %v2642
    %v2647 = vpack.c.bf16 %v2643, %v2643
    %v2648 = vpack.c.bf16 %v2644, %v2644
    %v2649 = vld [vmem:[#allocation29] sm:$0xff]
    %v2650 = vld [vmem:[#allocation29 + $0x8] sm:$0xff]
    %v2651 = vld [vmem:[#allocation29 + $0x10] sm:$0xff]
    %v2652 = vld [vmem:[#allocation29 + $0x18] sm:$0xff]
    %v2653 = vld [vmem:[#allocation29 + $0x20] sm:$0xff]
    %v2654 = vld [vmem:[#allocation29 + $0x28] sm:$0xff]
    %v2655 = vld [vmem:[#allocation29 + $0x30] sm:$0xff]
    %v2656 = vld [vmem:[#allocation29 + $0x38] sm:$0xff]
    %v2657 = vld [vmem:[#allocation29 + $0x40] sm:$0xff]
    %v2658 = vld [vmem:[#allocation29 + $0x48] sm:$0xff]
    %v2659 = vld [vmem:[#allocation29 + $0x50] sm:$0xff]
    %v2660 = vld [vmem:[#allocation29 + $0x58] sm:$0xff]
    %v2661 = vld [vmem:[#allocation29 + $0x60] sm:$0xff]
    %v2662 = vld [vmem:[#allocation29 + $0x68] sm:$0xff]
    %v2663 = vld [vmem:[#allocation29 + $0x70] sm:$0xff]
    %v2664 = vld [vmem:[#allocation29 + $0x78] sm:$0xff]
    %v2665 = vld [vmem:[#allocation29 + $0x80] sm:$0xff]
    %v2666 = vld [vmem:[#allocation29 + $0x88] sm:$0xff]
    %v2667 = vld [vmem:[#allocation29 + $0x90] sm:$0xff]
    %v2668 = vld [vmem:[#allocation29 + $0x98] sm:$0xff]
    %v2669 = vld [vmem:[#allocation29 + $0xa0] sm:$0xff]
    %v2670 = vld [vmem:[#allocation29 + $0xa8] sm:$0xff]
    %v2671 = vld [vmem:[#allocation29 + $0xb0] sm:$0xff]
    %v2672 = vld [vmem:[#allocation29 + $0xb8] sm:$0xff]
    %v2673 = vld [vmem:[#allocation29 + $0xc0] sm:$0xff]
    %v2674 = vld [vmem:[#allocation29 + $0xc8] sm:$0xff]
    %v2675 = vld [vmem:[#allocation29 + $0xd0] sm:$0xff]
    %v2676 = vld [vmem:[#allocation29 + $0xd8] sm:$0xff]
    %v2677 = vld [vmem:[#allocation29 + $0xe0] sm:$0xff]
    %v2678 = vld [vmem:[#allocation29 + $0xe8] sm:$0xff]
    %v2679 = vld [vmem:[#allocation29 + $0xf0] sm:$0xff]
    %v2680 = vld [vmem:[#allocation29 + $0xf8] sm:$0xff]
    %v2681 = vld [vmem:[#allocation29 + $0x100] sm:$0xff]
    %v2682 = vld [vmem:[#allocation29 + $0x108] sm:$0xff]
    %v2683 = vld [vmem:[#allocation29 + $0x110] sm:$0xff]
    %v2684 = vld [vmem:[#allocation29 + $0x118] sm:$0xff]
    %v2685 = vld [vmem:[#allocation29 + $0x120] sm:$0xff]
    %v2686 = vld [vmem:[#allocation29 + $0x128] sm:$0xff]
    %v2687 = vld [vmem:[#allocation29 + $0x130] sm:$0xff]
    %v2688 = vld [vmem:[#allocation29 + $0x138] sm:$0xff]
    %v2689 = vld [vmem:[#allocation29 + $0x140] sm:$0xff]
    %v2690 = vld [vmem:[#allocation29 + $0x148] sm:$0xff]
    %v2691 = vld [vmem:[#allocation29 + $0x150] sm:$0xff]
    %v2692 = vld [vmem:[#allocation29 + $0x158] sm:$0xff]
    %v2693 = vld [vmem:[#allocation29 + $0x160] sm:$0xff]
    %v2694 = vld [vmem:[#allocation29 + $0x168] sm:$0xff]
    %v2695 = vld [vmem:[#allocation29 + $0x170] sm:$0xff]
    %v2696 = vld [vmem:[#allocation29 + $0x178] sm:$0xff]
    %v2697 = vld [vmem:[#allocation29 + $0x180] sm:$0xff]
    %v2698 = vld [vmem:[#allocation29 + $0x188] sm:$0xff]
    %v2699 = vld [vmem:[#allocation29 + $0x190] sm:$0xff]
    %v2700 = vld [vmem:[#allocation29 + $0x198] sm:$0xff]
    %v2701 = vld [vmem:[#allocation29 + $0x1a0] sm:$0xff]
    %v2702 = vld [vmem:[#allocation29 + $0x1a8] sm:$0xff]
    %v2703 = vld [vmem:[#allocation29 + $0x1b0] sm:$0xff]
    %v2704 = vld [vmem:[#allocation29 + $0x1b8] sm:$0xff]
    %v2705 = vld [vmem:[#allocation29 + $0x1c0] sm:$0xff]
    %v2706 = vld [vmem:[#allocation29 + $0x1c8] sm:$0xff]
    %v2707 = vld [vmem:[#allocation29 + $0x1d0] sm:$0xff]
    %v2708 = vld [vmem:[#allocation29 + $0x1d8] sm:$0xff]
    %v2709 = vld [vmem:[#allocation29 + $0x1e0] sm:$0xff]
    %v2710 = vld [vmem:[#allocation29 + $0x1e8] sm:$0xff]
    %v2711 = vld [vmem:[#allocation29 + $0x1f0] sm:$0xff]
    %v2712 = vld [vmem:[#allocation29 + $0x1f8] sm:$0xff]
    %v2713 = vld [vmem:[#allocation31] sm:$0x3]
    %v2715 = vlaneseq
    %v2716 = vshrl.u32 %v2715, 7
    %v2717 = vsub.s32 0, %v2716
    %v2718 = vrot.slane %v2713, %v2717
    %v2719 = vlaneseq
    %v2720 = vshrl.u32 %v2719, 7
    %v2721 = vsub.s32 1, %v2720
    %v2722 = vrot.slane %v2713, %v2721
    %v2789 = vunpack.c.l.b16 %v2649
    %v2790 = vunpack.c.h.b16 %v2649
    %v2791 = vunpack.c.l.b16 %v2650
    %v2792 = vunpack.c.h.b16 %v2650
    %v2793 = vunpack.c.l.b16 %v2651
    %v2794 = vunpack.c.h.b16 %v2651
    %v2795 = vunpack.c.l.b16 %v2652
    %v2796 = vunpack.c.h.b16 %v2652
    %v2797 = vunpack.c.l.b16 %v2653
    %v2798 = vunpack.c.h.b16 %v2653
    %v2799 = vunpack.c.l.b16 %v2654
    %v2800 = vunpack.c.h.b16 %v2654
    %v2801 = vunpack.c.l.b16 %v2655
    %v2802 = vunpack.c.h.b16 %v2655
    %v2803 = vunpack.c.l.b16 %v2656
    %v2804 = vunpack.c.h.b16 %v2656
    %v2805 = vunpack.c.l.b16 %v2657
    %v2806 = vunpack.c.h.b16 %v2657
    %v2807 = vunpack.c.l.b16 %v2658
    %v2808 = vunpack.c.h.b16 %v2658
    %v2809 = vunpack.c.l.b16 %v2659
    %v2810 = vunpack.c.h.b16 %v2659
    %v2811 = vunpack.c.l.b16 %v2660
    %v2812 = vunpack.c.h.b16 %v2660
    %v2813 = vunpack.c.l.b16 %v2661
    %v2814 = vunpack.c.h.b16 %v2661
    %v2815 = vunpack.c.l.b16 %v2662
    %v2816 = vunpack.c.h.b16 %v2662
    %v2817 = vunpack.c.l.b16 %v2663
    %v2818 = vunpack.c.h.b16 %v2663
    %v2819 = vunpack.c.l.b16 %v2664
    %v2820 = vunpack.c.h.b16 %v2664
    %v2821 = vunpack.c.l.b16 %v2665
    %v2822 = vunpack.c.h.b16 %v2665
    %v2823 = vunpack.c.l.b16 %v2666
    %v2824 = vunpack.c.h.b16 %v2666
    %v2825 = vunpack.c.l.b16 %v2667
    %v2826 = vunpack.c.h.b16 %v2667
    %v2827 = vunpack.c.l.b16 %v2668
    %v2828 = vunpack.c.h.b16 %v2668
    %v2829 = vunpack.c.l.b16 %v2669
    %v2830 = vunpack.c.h.b16 %v2669
    %v2831 = vunpack.c.l.b16 %v2670
    %v2832 = vunpack.c.h.b16 %v2670
    %v2833 = vunpack.c.l.b16 %v2671
    %v2834 = vunpack.c.h.b16 %v2671
    %v2835 = vunpack.c.l.b16 %v2672
    %v2836 = vunpack.c.h.b16 %v2672
    %v2837 = vunpack.c.l.b16 %v2673
    %v2838 = vunpack.c.h.b16 %v2673
    %v2839 = vunpack.c.l.b16 %v2674
    %v2840 = vunpack.c.h.b16 %v2674
    %v2841 = vunpack.c.l.b16 %v2675
    %v2842 = vunpack.c.h.b16 %v2675
    %v2843 = vunpack.c.l.b16 %v2676
    %v2844 = vunpack.c.h.b16 %v2676
    %v2845 = vunpack.c.l.b16 %v2677
    %v2846 = vunpack.c.h.b16 %v2677
    %v2847 = vunpack.c.l.b16 %v2678
    %v2848 = vunpack.c.h.b16 %v2678
    %v2849 = vunpack.c.l.b16 %v2679
    %v2850 = vunpack.c.h.b16 %v2679
    %v2851 = vunpack.c.l.b16 %v2680
    %v2852 = vunpack.c.h.b16 %v2680
    %v2853 = vunpack.c.l.b16 %v2681
    %v2854 = vunpack.c.h.b16 %v2681
    %v2855 = vunpack.c.l.b16 %v2682
    %v2856 = vunpack.c.h.b16 %v2682
    %v2857 = vunpack.c.l.b16 %v2683
    %v2858 = vunpack.c.h.b16 %v2683
    %v2859 = vunpack.c.l.b16 %v2684
    %v2860 = vunpack.c.h.b16 %v2684
    %v2861 = vunpack.c.l.b16 %v2685
    %v2862 = vunpack.c.h.b16 %v2685
    %v2863 = vunpack.c.l.b16 %v2686
    %v2864 = vunpack.c.h.b16 %v2686
    %v2865 = vunpack.c.l.b16 %v2687
    %v2866 = vunpack.c.h.b16 %v2687
    %v2867 = vunpack.c.l.b16 %v2688
    %v2868 = vunpack.c.h.b16 %v2688
    %v2869 = vunpack.c.l.b16 %v2689
    %v2870 = vunpack.c.h.b16 %v2689
    %v2871 = vunpack.c.l.b16 %v2690
    %v2872 = vunpack.c.h.b16 %v2690
    %v2873 = vunpack.c.l.b16 %v2691
    %v2874 = vunpack.c.h.b16 %v2691
    %v2875 = vunpack.c.l.b16 %v2692
    %v2876 = vunpack.c.h.b16 %v2692
    %v2877 = vunpack.c.l.b16 %v2693
    %v2878 = vunpack.c.h.b16 %v2693
    %v2879 = vunpack.c.l.b16 %v2694
    %v2880 = vunpack.c.h.b16 %v2694
    %v2881 = vunpack.c.l.b16 %v2695
    %v2882 = vunpack.c.h.b16 %v2695
    %v2883 = vunpack.c.l.b16 %v2696
    %v2884 = vunpack.c.h.b16 %v2696
    %v2885 = vunpack.c.l.b16 %v2697
    %v2886 = vunpack.c.h.b16 %v2697
    %v2887 = vunpack.c.l.b16 %v2698
    %v2888 = vunpack.c.h.b16 %v2698
    %v2889 = vunpack.c.l.b16 %v2699
    %v2890 = vunpack.c.h.b16 %v2699
    %v2891 = vunpack.c.l.b16 %v2700
    %v2892 = vunpack.c.h.b16 %v2700
    %v2893 = vunpack.c.l.b16 %v2701
    %v2894 = vunpack.c.h.b16 %v2701
    %v2895 = vunpack.c.l.b16 %v2702
    %v2896 = vunpack.c.h.b16 %v2702
    %v2897 = vunpack.c.l.b16 %v2703
    %v2898 = vunpack.c.h.b16 %v2703
    %v2899 = vunpack.c.l.b16 %v2704
    %v2900 = vunpack.c.h.b16 %v2704
    %v2901 = vunpack.c.l.b16 %v2705
    %v2902 = vunpack.c.h.b16 %v2705
    %v2903 = vunpack.c.l.b16 %v2706
    %v2904 = vunpack.c.h.b16 %v2706
    %v2905 = vunpack.c.l.b16 %v2707
    %v2906 = vunpack.c.h.b16 %v2707
    %v2907 = vunpack.c.l.b16 %v2708
    %v2908 = vunpack.c.h.b16 %v2708
    %v2909 = vunpack.c.l.b16 %v2709
    %v2910 = vunpack.c.h.b16 %v2709
    %v2911 = vunpack.c.l.b16 %v2710
    %v2912 = vunpack.c.h.b16 %v2710
    %v2913 = vunpack.c.l.b16 %v2711
    %v2914 = vunpack.c.h.b16 %v2711
    %v2915 = vunpack.c.l.b16 %v2712
    %v2916 = vunpack.c.h.b16 %v2712
    %v2917 = vpack.c.b16 %v2791, %v2789
    %v2918 = vpack.c.b16 %v2792, %v2790
    %v2919 = vpack.c.b16 %v2795, %v2793
    %v2920 = vpack.c.b16 %v2796, %v2794
    %v2921 = vpack.c.b16 %v2799, %v2797
    %v2922 = vpack.c.b16 %v2800, %v2798
    %v2923 = vpack.c.b16 %v2803, %v2801
    %v2924 = vpack.c.b16 %v2804, %v2802
    %v2925 = vpack.c.b16 %v2807, %v2805
    %v2926 = vpack.c.b16 %v2808, %v2806
    %v2927 = vpack.c.b16 %v2811, %v2809
    %v2928 = vpack.c.b16 %v2812, %v2810
    %v2929 = vpack.c.b16 %v2815, %v2813
    %v2930 = vpack.c.b16 %v2816, %v2814
    %v2931 = vpack.c.b16 %v2819, %v2817
    %v2932 = vpack.c.b16 %v2820, %v2818
    %v2933 = vpack.c.b16 %v2823, %v2821
    %v2934 = vpack.c.b16 %v2824, %v2822
    %v2935 = vpack.c.b16 %v2827, %v2825
    %v2936 = vpack.c.b16 %v2828, %v2826
    %v2937 = vpack.c.b16 %v2831, %v2829
    %v2938 = vpack.c.b16 %v2832, %v2830
    %v2939 = vpack.c.b16 %v2835, %v2833
    %v2940 = vpack.c.b16 %v2836, %v2834
    %v2941 = vpack.c.b16 %v2839, %v2837
    %v2942 = vpack.c.b16 %v2840, %v2838
    %v2943 = vpack.c.b16 %v2843, %v2841
    %v2944 = vpack.c.b16 %v2844, %v2842
    %v2945 = vpack.c.b16 %v2847, %v2845
    %v2946 = vpack.c.b16 %v2848, %v2846
    %v2947 = vpack.c.b16 %v2851, %v2849
    %v2948 = vpack.c.b16 %v2852, %v2850
    %v2949 = vpack.c.b16 %v2855, %v2853
    %v2950 = vpack.c.b16 %v2856, %v2854
    %v2951 = vpack.c.b16 %v2859, %v2857
    %v2952 = vpack.c.b16 %v2860, %v2858
    %v2953 = vpack.c.b16 %v2863, %v2861
    %v2954 = vpack.c.b16 %v2864, %v2862
    %v2955 = vpack.c.b16 %v2867, %v2865
    %v2956 = vpack.c.b16 %v2868, %v2866
    %v2957 = vpack.c.b16 %v2871, %v2869
    %v2958 = vpack.c.b16 %v2872, %v2870
    %v2959 = vpack.c.b16 %v2875, %v2873
    %v2960 = vpack.c.b16 %v2876, %v2874
    %v2961 = vpack.c.b16 %v2879, %v2877
    %v2962 = vpack.c.b16 %v2880, %v2878
    %v2963 = vpack.c.b16 %v2883, %v2881
    %v2964 = vpack.c.b16 %v2884, %v2882
    %v2965 = vpack.c.b16 %v2887, %v2885
    %v2966 = vpack.c.b16 %v2888, %v2886
    %v2967 = vpack.c.b16 %v2891, %v2889
    %v2968 = vpack.c.b16 %v2892, %v2890
    %v2969 = vpack.c.b16 %v2895, %v2893
    %v2970 = vpack.c.b16 %v2896, %v2894
    %v2971 = vpack.c.b16 %v2899, %v2897
    %v2972 = vpack.c.b16 %v2900, %v2898
    %v2973 = vpack.c.b16 %v2903, %v2901
    %v2974 = vpack.c.b16 %v2904, %v2902
    %v2975 = vpack.c.b16 %v2907, %v2905
    %v2976 = vpack.c.b16 %v2908, %v2906
    %v2977 = vpack.c.b16 %v2911, %v2909
    %v2978 = vpack.c.b16 %v2912, %v2910
    %v2979 = vpack.c.b16 %v2915, %v2913
    %v2980 = vpack.c.b16 %v2916, %v2914
    %3045 = vmatprep.subr.bf16.mxu0 %v2932
    %3046 = vmatpush1.bf16.msra.mxu0 %v2931
    %3047 = vmatprep.subr.bf16.mxu0 %v2930
    %3048 = vmatpush1.bf16.msra.mxu0 %v2929
    %3049 = vmatprep.subr.bf16.mxu0 %v2928
    %3050 = vmatpush1.bf16.msra.mxu0 %v2927
    %3051 = vmatprep.subr.bf16.mxu0 %v2926
    %3052 = vmatpush1.bf16.msra.mxu0 %v2925
    %3053 = vmatprep.subr.bf16.mxu0 %v2924
    %3054 = vmatpush1.bf16.msra.mxu0 %v2923
    %3055 = vmatprep.subr.bf16.mxu0 %v2922
    %3056 = vmatpush1.bf16.msra.mxu0 %v2921
    %3057 = vmatprep.subr.bf16.mxu0 %v2920
    %3058 = vmatpush1.bf16.msra.mxu0 %v2919
    %3059 = vmatprep.subr.bf16.mxu0 %v2918
    %3060 = vmatpush1.bf16.msra.mxu0 %v2917
    %3061 = vmatprep.subr.bf16.mxu0 %v2948
    %3062 = vmatpush2.bf16.msra.mxu0 %v2947
    %3063 = vmatprep.subr.bf16.mxu0 %v2946
    %3064 = vmatpush2.bf16.msra.mxu0 %v2945
    %3065 = vmatprep.subr.bf16.mxu0 %v2944
    %3066 = vmatpush2.bf16.msra.mxu0 %v2943
    %3067 = vmatprep.subr.bf16.mxu0 %v2942
    %3068 = vmatpush2.bf16.msra.mxu0 %v2941
    %3069 = vmatprep.subr.bf16.mxu0 %v2940
    %3070 = vmatpush2.bf16.msra.mxu0 %v2939
    %3071 = vmatprep.subr.bf16.mxu0 %v2938
    %3072 = vmatpush2.bf16.msra.mxu0 %v2937
    %3073 = vmatprep.subr.bf16.mxu0 %v2936
    %3074 = vmatpush2.bf16.msra.mxu0 %v2935
    %3075 = vmatprep.subr.bf16.mxu0 %v2934
    %3076 = vmatpush2.bf16.msra.mxu0 %v2933
    %3077 = vmatprep.mubr.bf16.mxu0 %v2646
    %3078 = vmatmul.mubr.bf16.gmra.mxu0 %v2645
    %v3079 = vpop.f32.mrf.mxu0
    %v3080 = vadd.f32 %v2718, %v3079
    %v3081 = vpop.f32.mrf.mxu0
    %v3082 = vadd.f32 %v2722, %v3081
    %v3083 = vpop.f32.mrf.mxu0
    %v3084 = vpop.f32.mrf.mxu0
    %3085 = vdwg.mxu0
    %3086 = vmatprep.subr.bf16.mxu0 %v2964
    %3087 = vmatpush1.bf16.msra.mxu0 %v2963
    %3088 = vmatprep.subr.bf16.mxu0 %v2962
    %3089 = vmatpush1.bf16.msra.mxu0 %v2961
    %3090 = vmatprep.subr.bf16.mxu0 %v2960
    %3091 = vmatpush1.bf16.msra.mxu0 %v2959
    %3092 = vmatprep.subr.bf16.mxu0 %v2958
    %3093 = vmatpush1.bf16.msra.mxu0 %v2957
    %3094 = vmatprep.subr.bf16.mxu0 %v2956
    %3095 = vmatpush1.bf16.msra.mxu0 %v2955
    %3096 = vmatprep.subr.bf16.mxu0 %v2954
    %3097 = vmatpush1.bf16.msra.mxu0 %v2953
    %3098 = vmatprep.subr.bf16.mxu0 %v2952
    %3099 = vmatpush1.bf16.msra.mxu0 %v2951
    %3100 = vmatprep.subr.bf16.mxu0 %v2950
    %3101 = vmatpush1.bf16.msra.mxu0 %v2949
    %3102 = vmatprep.subr.bf16.mxu0 %v2980
    %3103 = vmatpush2.bf16.msra.mxu0 %v2979
    %3104 = vmatprep.subr.bf16.mxu0 %v2978
    %3105 = vmatpush2.bf16.msra.mxu0 %v2977
    %3106 = vmatprep.subr.bf16.mxu0 %v2976
    %3107 = vmatpush2.bf16.msra.mxu0 %v2975
    %3108 = vmatprep.subr.bf16.mxu0 %v2974
    %3109 = vmatpush2.bf16.msra.mxu0 %v2973
    %3110 = vmatprep.subr.bf16.mxu0 %v2972
    %3111 = vmatpush2.bf16.msra.mxu0 %v2971
    %3112 = vmatprep.subr.bf16.mxu0 %v2970
    %3113 = vmatpush2.bf16.msra.mxu0 %v2969
    %3114 = vmatprep.subr.bf16.mxu0 %v2968
    %3115 = vmatpush2.bf16.msra.mxu0 %v2967
    %3116 = vmatprep.subr.bf16.mxu0 %v2966
    %3117 = vmatpush2.bf16.msra.mxu0 %v2965
    %3118 = vmatprep.mubr.bf16.mxu0 %v2648
    %3119 = vmatmul.mubr.bf16.gmra.mxu0 %v2647
    %v3120 = vpop.f32.mrf.mxu0
    %v3121 = vadd.f32 %v3080, %v3120
    %v3122 = vpop.f32.mrf.mxu0
    %v3123 = vadd.f32 %v3082, %v3122
    %v3124 = vpop.f32.mrf.mxu0
    %v3125 = vpop.f32.mrf.mxu0
    %3126 = vdwg.mxu0
    %v3127 = vsub.f32 0.0, %v3121
    %v3128 = vsub.f32 0.0, %v3123
    %v3129 = vmul.f32 %v3127, 1.442695
    %v3130 = vpow.pop %v3129
    %v3131 = vmul.f32 %v3128, 1.442695
    %v3132 = vpow.pop %v3131
    %v3133 = vadd.f32 %v3130, 1.0
    %v3134 = vadd.f32 %v3132, 1.0
    %v3135 = vrcp.pop %v3133
    %v3136 = vrcp.pop %v3134
    %3137 = vst [vmem:[#allocation32] sm:$0xff] %v3135
    %3138 = vst [vmem:[#allocation32 + $0x8] sm:$0xff] %v3136
    // Predicated region
    $region166: #{vae_forward.1} parent=1 // pred_check
      _
    $region167: #{vae_forward.1} parent=1 // pred_check_branch
      %3140 = sbr.rel (0) target = $region169
    $region168: #{vae_forward.1} parent=1 // pred_region
      %s3142 = ssub.s32 256, 256
      %3143 = vsyncadd [#allocation4], %s3142
      %s3145 = sshll.u32 [#allocation32], 4
      %s3146 = int_to_ptr.vmem [resolvable:$true] %s3145
      %3148 = dma.vmem_to_hbm [thread:$0]  %s3146, 256, %s22, [#allocation4]
    $region169: #{vae_forward.1} parent=1 // pred_fallthru
      _
    // Predicated region
    $region170: #{vae_forward.1} parent=1 // pred_check
      _
    $region171: #{vae_forward.1} parent=1 // pred_check_branch
      %3150 = sbr.rel (0) target = $region173
    $region172: #{vae_forward.1} parent=1 // pred_region
      _
    $region173: #{vae_forward.1} parent=1 // pred_fallthru
      _
    // Predicated region
    $region174: #{vae_forward.1} parent=1 // pred_check
      _
    $region175: #{vae_forward.1} parent=1 // pred_check_branch
      %3152 = sbr.rel (0) target = $region177
    $region176: #{vae_forward.1} parent=1 // pred_region
      %3153 = dma.done [#allocation4], 256
    $region177: #{vae_forward.1} parent=1 // pred_fallthru
      _
    // Predicated region
    $region178: #{vae_forward.1} parent=1 // pred_check
      _
    $region179: #{vae_forward.1} parent=1 // pred_check_branch
      %3155 = sbr.rel (0) target = $region181
    $region180: #{vae_forward.1} parent=1 // pred_region
      _
    $region181: #{vae_forward.1} parent=1 // pred_fallthru
      _
    %3156 = vsyncpa [#allocation3], 1
    %3157 = vsyncpa [#allocation6], 1
    %3158 = vsyncpa [#allocation9], 1
    %3159 = vsyncpa [#allocation12], 1
    %3160 = vsyncpa [#allocation15], 1
    %3161 = vsyncpa [#allocation18], 1
    %3162 = vsyncpa [#allocation21], 1
    %3163 = vsyncpa [#allocation24], 1
    %3164 = vsyncpa [#allocation27], 1
    %3165 = vsyncpa [#allocation30], 1
    %3166 = vsyncpa [#allocation4], 1

</llo_original>
